<compile_context>
chip_gen: v6e
topology: v6e:2x2x1
jax: 0.10.0
libtpu: 0.0.40
codegen_flags: <defaults>
</compile_context>

<pallas_src>
import functools

import jax
import jax.numpy as jnp
from jax.experimental import pallas as pl
from jax.experimental.pallas import tpu as pltpu

_HP = jax.lax.Precision.HIGHEST


# ----------------------------------------------------------------------------
# Pallas kernel: recurrent part of one liGRU direction, CHUNK timesteps per
# grid step. Hidden state lives in a VMEM scratch that persists across the
# sequential ("arbitrary") grid.
# ----------------------------------------------------------------------------
def _ligru_rec_kernel(pre_ref, u_ref, out_ref, h_scr, *, chunk, hidden, reverse):
    # pre_ref : (chunk, B, 2H)  x_t @ [Wz|Wh] pre-activations for this chunk
    # u_ref   : (H, 2H)         fused recurrent weights [Uz|Uh]
    # out_ref : (chunk, B, H)   hidden states for this chunk
    # h_scr   : (B, H) f32      carried hidden state
    @pl.when(pl.program_id(0) == 0)
    def _():
        # init_hidden=None in the PyTorch module -> zeros
        h_scr[...] = jnp.zeros_like(h_scr)

    h = h_scr[...]
    u = u_ref[...]

    # Static, fully-unrolled inner time loop (chunk is small).
    steps = range(chunk - 1, -1, -1) if reverse else range(chunk)
    for t in steps:
        g = pre_ref[t].astype(jnp.float32) + jnp.dot(
            h, u, preferred_element_type=jnp.float32)            # (B, 2H)
        z = jax.nn.sigmoid(g[:, :hidden])
        hcand = jnp.maximum(g[:, hidden:], 0.0)
        h = z * h + (1.0 - z) * hcand
        out_ref[t] = h.astype(out_ref.dtype)

    h_scr[...] = h


def _pick_chunk(t, target=16):
    """Largest divisor of t that is <= target."""
    c = min(t, target)
    while t % c:
        c -= 1
    return c


@functools.partial(jax.jit, static_argnames=("reverse",))
def _run_ligru_direction(x, wz, wh, uz, uh, *, reverse=False):
    """x: (T, B, D); Wz/Wh: (D, H), Uz/Uh: (H, H). Returns (T,B,H), (B,H)."""
    T, B, D = x.shape
    H = uz.shape[0]

    # (1) Hoisted input projection: one big MXU-friendly matmul (M = T*B).
    w_cat = jnp.concatenate([wz, wh], axis=1)                      # (D, 2H)
    pre = jnp.matmul(x.reshape(T * B, D), w_cat,
                     precision=_HP).reshape(T, B, 2 * H)

    # (2) Fused recurrent weights.
    u_cat = jnp.concatenate([uz, uh], axis=1)                      # (H, 2H)

    # (3) Time chunking.
    chunk = _pick_chunk(T)
    num_chunks = T // chunk

    # (4) Backward direction == reversed chunk order (no jnp.flip anywhere).
    if reverse:
        t_map = lambda c: (num_chunks - 1 - c, 0, 0)
    else:
        t_map = lambda c: (c, 0, 0)

    out = pl.pallas_call(
        functools.partial(_ligru_rec_kernel,
                          chunk=chunk, hidden=H, reverse=reverse),
        out_shape=jax.ShapeDtypeStruct((T, B, H), x.dtype),
        grid_spec=pltpu.PrefetchScalarGridSpec(
            num_scalar_prefetch=0,
            grid=(num_chunks,),
            in_specs=[
                pl.BlockSpec((chunk, B, 2 * H), t_map),            # pre-acts
                pl.BlockSpec((H, 2 * H), lambda c: (0, 0)),        # U (constant)
            ],
            out_specs=pl.BlockSpec((chunk, B, H), t_map),
            scratch_shapes=[pltpu.VMEM((B, H), jnp.float32)],      # carried h
        ),
        compiler_params=pltpu.CompilerParams(
            dimension_semantics=("arbitrary",)),                   # sequential
    )(pre, u_cat)

    # (5) Last hidden derived from the output (no per-step hlast stores).
    hlast = out[0] if reverse else out[-1]
    return out, hlast


# ----------------------------------------------------------------------------
# Pure-JAX reference for the same cell (used only to validate the kernel).
# ----------------------------------------------------------------------------
def _ligru_direction_ref(x, wz, wh, uz, uh, *, reverse=False):
    H = uz.shape[0]
    xs = jnp.flip(x, axis=0) if reverse else x

    def step(h, xt):
        z = jax.nn.sigmoid(jnp.dot(xt, wz, precision=_HP)
                           + jnp.dot(h, uz, precision=_HP))
        hc = jnp.maximum(jnp.dot(xt, wh, precision=_HP)
                         + jnp.dot(h, uh, precision=_HP), 0.0)
        h_new = z * h + (1.0 - z) * hc
        return h_new, h_new

    h0 = jnp.zeros((x.shape[1], H), jnp.float32)
    hlast, outs = jax.lax.scan(step, h0, xs)
    if reverse:
        outs = jnp.flip(outs, axis=0)
    return outs, hlast


# ----------------------------------------------------------------------------
# liGRUFrame forward (multi-layer, bidirectional), mirroring the PyTorch code.
# ----------------------------------------------------------------------------
def ligru_frame_forward(x, params, bidirectional,
                        direction_fn=_run_ligru_direction):
    """
    x      : (seq_len, batch, input_size)
    params : params[layer][direction] = (Wz, Wh, Uz, Uh)
    returns: output (T, B, num_dir*H), last_hidden (num_layers*num_dir, B, H)
    """
    num_directions = 2 if bidirectional else 1
    num_layers = len(params)

    last_hidden_list = []
    layer_output = x
    for layer_idx in range(num_layers):
        layer_input = layer_output                 # dropout==0 -> identity
        direction_output_list = []
        for direction in range(num_directions):
            wz, wh, uz, uh = params[layer_idx][direction]
            out, hlast = direction_fn(layer_input, wz, wh, uz, uh,
                                      reverse=(direction == 1))
            direction_output_list.append(out)
            last_hidden_list.append(hlast)
        if num_directions == 2:
            # == torch.stack(dim=2).view(T, B, -1)
            layer_output = jnp.concatenate(direction_output_list, axis=-1)
        else:
            layer_output = direction_output_list[0]

    output = layer_output
    last_hidden_tensor = jnp.stack(last_hidden_list, axis=0)
    return output, last_hidden_tensor


# ----------------------------------------------------------------------------
# Deterministic parameter construction.
# ----------------------------------------------------------------------------
def make_params(key, input_size, hidden_size, num_layers, bidirectional):
    num_directions = 2 if bidirectional else 1
    params = []
    for layer_idx in range(num_layers):
        d_in = input_size if layer_idx == 0 else num_directions * hidden_size
        layer_params = []
        for _ in range(num_directions):
            key, k1, k2, k3, k4 = jax.random.split(key, 5)
            scale = 1.0 / jnp.sqrt(jnp.float32(hidden_size))
            wz = jax.random.uniform(k1, (d_in, hidden_size), jnp.float32, -scale, scale)
            wh = jax.random.uniform(k2, (d_in, hidden_size), jnp.float32, -scale, scale)
            uz = jax.random.uniform(k3, (hidden_size, hidden_size), jnp.float32, -scale, scale)
            uh = jax.random.uniform(k4, (hidden_size, hidden_size), jnp.float32, -scale, scale)
            layer_params.append((wz, wh, uz, uh))
        params.append(layer_params)
    return params


if __name__ == "__main__":
    SEQ, BATCH, INPUT, HIDDEN = 32, 8, 16, 32
    NUM_LAYERS, BIDIRECTIONAL = 2, True

    root = jax.random.PRNGKey(0)
    kx, kp = jax.random.split(root)
    x = jax.random.normal(kx, (SEQ, BATCH, INPUT), dtype=jnp.float32)
    params = make_params(kp, INPUT, HIDDEN, NUM_LAYERS, BIDIRECTIONAL)

    out, h_n = ligru_frame_forward(x, params, BIDIRECTIONAL)
    out = jax.block_until_ready(out)
    h_n = jax.block_until_ready(h_n)

    # sanity shapes
    assert out.shape == (SEQ, BATCH, 2 * HIDDEN)
    assert h_n.shape == (NUM_LAYERS * 2, BATCH, HIDDEN)

    # validate against pure-JAX reference of the same semantics
    out_ref, h_ref = ligru_frame_forward(
        x, params, BIDIRECTIONAL, direction_fn=_ligru_direction_ref)
    assert jnp.allclose(out, out_ref, atol=1e-4, rtol=1e-4)
    assert jnp.allclose(h_n, h_ref, atol=1e-4, rtol=1e-4)

    print("KERNEL_OK")
</pallas_src>

<mosaic_0001>
module attributes {stable_mosaic.version = 11 : i64} {
  func.func @_ligru_rec_kernel(%arg0: i32, %arg1: memref<16x8x64xf32, #tpu.memory_space<vmem>>, %arg2: memref<32x64xf32, #tpu.memory_space<vmem>>, %arg3: memref<16x8x32xf32, #tpu.memory_space<vmem>>, %arg4: memref<8x32xf32, #tpu.memory_space<vmem>>) attributes {dimension_semantics = [#tpu.dimension_semantics<arbitrary>], iteration_bounds = array<i64: 2>, scalar_prefetch = 0 : i64, scratch_operands = 1 : i64, tpu.core_type = #tpu.core_type<tc>, window_params = [{transform_indices = @transform_0, window_bounds = array<i64: 16, 8, 64>}, {pipeline_mode = #tpu.pipeline_mode<synchronous>, transform_indices = @transform_1, window_bounds = array<i64: 32, 64>}, {transform_indices = @transform_2, window_bounds = array<i64: 16, 8, 32>}]} {
    %c0_i32 = arith.constant 0 : i32
    %0 = arith.cmpi eq, %arg0, %c0_i32 : i32
    %1 = arith.extui %0 : i1 to i32
    %c0_i32_0 = arith.constant 0 : i32
    %2 = arith.cmpi ne, %1, %c0_i32_0 : i32
    scf.if %2 {
      %cst_150 = arith.constant 0.000000e+00 : f32
      %342 = vector.broadcast %cst_150 : f32 to vector<8x32xf32>
      %c0_151 = arith.constant 0 : index
      %c0_152 = arith.constant 0 : index
      %343 = vector.load %arg4[%c0_151, %c0_152] : memref<8x32xf32, #tpu.memory_space<vmem>>, vector<8x32xf32>
      tpu.vector_store %arg4[%c0_151, %c0_152], %342 {strides = array<i32>} : memref<8x32xf32, #tpu.memory_space<vmem>>, vector<8x32xf32>,
    } else {
    }
    %c0 = arith.constant 0 : index
    %c0_1 = arith.constant 0 : index
    %3 = vector.load %arg4[%c0, %c0_1] : memref<8x32xf32, #tpu.memory_space<vmem>>, vector<8x32xf32>
    %c0_2 = arith.constant 0 : index
    %c0_3 = arith.constant 0 : index
    %4 = vector.load %arg2[%c0_2, %c0_3] : memref<32x64xf32, #tpu.memory_space<vmem>>, vector<32x64xf32>
    %c0_4 = arith.constant 0 : index
    %c0_5 = arith.constant 0 : index
    %c0_6 = arith.constant 0 : index
    %5 = vector.load %arg1[%c0_4, %c0_5, %c0_6] : memref<16x8x64xf32, #tpu.memory_space<vmem>>, vector<1x8x64xf32>
    %6 = vector.shape_cast %5 : vector<1x8x64xf32> to vector<8x64xf32>
    %cst = arith.constant dense<0.000000e+00> : vector<8x64xf32>
    %7 = tpu.matmul %3, %4, %cst {dimension_numbers = #tpu.dot_dimension_numbers<[1], [0], [0], [1], [0, 0, 1, 1], [], []>} : vector<8x32xf32>, vector<32x64xf32>, vector<8x64xf32> -> vector<8x64xf32>
    %8 = arith.addf %6, %7 : vector<8x64xf32>
    %9 = vector.extract_strided_slice %8 {offsets = [0, 0], sizes = [8, 32], strides = [1, 1]} : vector<8x64xf32> to vector<8x32xf32>
    %10 = arith.negf %9 : vector<8x32xf32>
    %11 = math.exp %10 : vector<8x32xf32>
    %cst_7 = arith.constant 1.000000e+00 : f32
    %12 = vector.broadcast %cst_7 : f32 to vector<8x32xf32>
    %13 = arith.addf %12, %11 : vector<8x32xf32>
    %14 = arith.divf %12, %13 : vector<8x32xf32>
    %15 = vector.extract_strided_slice %8 {offsets = [0, 32], sizes = [8, 32], strides = [1, 1]} : vector<8x64xf32> to vector<8x32xf32>
    %cst_8 = arith.constant 0.000000e+00 : f32
    %16 = vector.broadcast %cst_8 : f32 to vector<8x32xf32>
    %17 = arith.maximumf %15, %16 : vector<8x32xf32>
    %18 = arith.mulf %14, %3 : vector<8x32xf32>
    %cst_9 = arith.constant 1.000000e+00 : f32
    %19 = vector.broadcast %cst_9 : f32 to vector<8x32xf32>
    %20 = arith.subf %19, %14 : vector<8x32xf32>
    %21 = arith.mulf %20, %17 : vector<8x32xf32>
    %22 = arith.addf %18, %21 : vector<8x32xf32>
    %c0_10 = arith.constant 0 : index
    %c0_11 = arith.constant 0 : index
    %c0_12 = arith.constant 0 : index
    %23 = vector.load %arg3[%c0_10, %c0_11, %c0_12] : memref<16x8x32xf32, #tpu.memory_space<vmem>>, vector<1x8x32xf32>
    %24 = vector.shape_cast %23 : vector<1x8x32xf32> to vector<8x32xf32>
    %25 = vector.shape_cast %22 : vector<8x32xf32> to vector<1x8x32xf32>
    tpu.vector_store %arg3[%c0_10, %c0_11, %c0_12], %25 {strides = array<i32>} : memref<16x8x32xf32, #tpu.memory_space<vmem>>, vector<1x8x32xf32>,
    %c1 = arith.constant 1 : index
    %c0_13 = arith.constant 0 : index
    %c0_14 = arith.constant 0 : index
    %26 = vector.load %arg1[%c1, %c0_13, %c0_14] : memref<16x8x64xf32, #tpu.memory_space<vmem>>, vector<1x8x64xf32>
    %27 = vector.shape_cast %26 : vector<1x8x64xf32> to vector<8x64xf32>
    %cst_15 = arith.constant dense<0.000000e+00> : vector<8x64xf32>
    %28 = tpu.matmul %22, %4, %cst_15 {dimension_numbers = #tpu.dot_dimension_numbers<[1], [0], [0], [1], [0, 0, 1, 1], [], []>} : vector<8x32xf32>, vector<32x64xf32>, vector<8x64xf32> -> vector<8x64xf32>
    %29 = arith.addf %27, %28 : vector<8x64xf32>
    %30 = vector.extract_strided_slice %29 {offsets = [0, 0], sizes = [8, 32], strides = [1, 1]} : vector<8x64xf32> to vector<8x32xf32>
    %31 = arith.negf %30 : vector<8x32xf32>
    %32 = math.exp %31 : vector<8x32xf32>
    %cst_16 = arith.constant 1.000000e+00 : f32
    %33 = vector.broadcast %cst_16 : f32 to vector<8x32xf32>
    %34 = arith.addf %33, %32 : vector<8x32xf32>
    %35 = arith.divf %33, %34 : vector<8x32xf32>
    %36 = vector.extract_strided_slice %29 {offsets = [0, 32], sizes = [8, 32], strides = [1, 1]} : vector<8x64xf32> to vector<8x32xf32>
    %cst_17 = arith.constant 0.000000e+00 : f32
    %37 = vector.broadcast %cst_17 : f32 to vector<8x32xf32>
    %38 = arith.maximumf %36, %37 : vector<8x32xf32>
    %39 = arith.mulf %35, %22 : vector<8x32xf32>
    %cst_18 = arith.constant 1.000000e+00 : f32
    %40 = vector.broadcast %cst_18 : f32 to vector<8x32xf32>
    %41 = arith.subf %40, %35 : vector<8x32xf32>
    %42 = arith.mulf %41, %38 : vector<8x32xf32>
    %43 = arith.addf %39, %42 : vector<8x32xf32>
    %c1_19 = arith.constant 1 : index
    %c0_20 = arith.constant 0 : index
    %c0_21 = arith.constant 0 : index
    %44 = vector.load %arg3[%c1_19, %c0_20, %c0_21] : memref<16x8x32xf32, #tpu.memory_space<vmem>>, vector<1x8x32xf32>
    %45 = vector.shape_cast %44 : vector<1x8x32xf32> to vector<8x32xf32>
    %46 = vector.shape_cast %43 : vector<8x32xf32> to vector<1x8x32xf32>
    tpu.vector_store %arg3[%c1_19, %c0_20, %c0_21], %46 {strides = array<i32>} : memref<16x8x32xf32, #tpu.memory_space<vmem>>, vector<1x8x32xf32>,
    %c2 = arith.constant 2 : index
    %c0_22 = arith.constant 0 : index
    %c0_23 = arith.constant 0 : index
    %47 = vector.load %arg1[%c2, %c0_22, %c0_23] : memref<16x8x64xf32, #tpu.memory_space<vmem>>, vector<1x8x64xf32>
    %48 = vector.shape_cast %47 : vector<1x8x64xf32> to vector<8x64xf32>
    %cst_24 = arith.constant dense<0.000000e+00> : vector<8x64xf32>
    %49 = tpu.matmul %43, %4, %cst_24 {dimension_numbers = #tpu.dot_dimension_numbers<[1], [0], [0], [1], [0, 0, 1, 1], [], []>} : vector<8x32xf32>, vector<32x64xf32>, vector<8x64xf32> -> vector<8x64xf32>
    %50 = arith.addf %48, %49 : vector<8x64xf32>
    %51 = vector.extract_strided_slice %50 {offsets = [0, 0], sizes = [8, 32], strides = [1, 1]} : vector<8x64xf32> to vector<8x32xf32>
    %52 = arith.negf %51 : vector<8x32xf32>
    %53 = math.exp %52 : vector<8x32xf32>
    %cst_25 = arith.constant 1.000000e+00 : f32
    %54 = vector.broadcast %cst_25 : f32 to vector<8x32xf32>
    %55 = arith.addf %54, %53 : vector<8x32xf32>
    %56 = arith.divf %54, %55 : vector<8x32xf32>
    %57 = vector.extract_strided_slice %50 {offsets = [0, 32], sizes = [8, 32], strides = [1, 1]} : vector<8x64xf32> to vector<8x32xf32>
    %cst_26 = arith.constant 0.000000e+00 : f32
    %58 = vector.broadcast %cst_26 : f32 to vector<8x32xf32>
    %59 = arith.maximumf %57, %58 : vector<8x32xf32>
    %60 = arith.mulf %56, %43 : vector<8x32xf32>
    %cst_27 = arith.constant 1.000000e+00 : f32
    %61 = vector.broadcast %cst_27 : f32 to vector<8x32xf32>
    %62 = arith.subf %61, %56 : vector<8x32xf32>
    %63 = arith.mulf %62, %59 : vector<8x32xf32>
    %64 = arith.addf %60, %63 : vector<8x32xf32>
    %c2_28 = arith.constant 2 : index
    %c0_29 = arith.constant 0 : index
    %c0_30 = arith.constant 0 : index
    %65 = vector.load %arg3[%c2_28, %c0_29, %c0_30] : memref<16x8x32xf32, #tpu.memory_space<vmem>>, vector<1x8x32xf32>
    %66 = vector.shape_cast %65 : vector<1x8x32xf32> to vector<8x32xf32>
    %67 = vector.shape_cast %64 : vector<8x32xf32> to vector<1x8x32xf32>
    tpu.vector_store %arg3[%c2_28, %c0_29, %c0_30], %67 {strides = array<i32>} : memref<16x8x32xf32, #tpu.memory_space<vmem>>, vector<1x8x32xf32>,
    %c3 = arith.constant 3 : index
    %c0_31 = arith.constant 0 : index
    %c0_32 = arith.constant 0 : index
    %68 = vector.load %arg1[%c3, %c0_31, %c0_32] : memref<16x8x64xf32, #tpu.memory_space<vmem>>, vector<1x8x64xf32>
    %69 = vector.shape_cast %68 : vector<1x8x64xf32> to vector<8x64xf32>
    %cst_33 = arith.constant dense<0.000000e+00> : vector<8x64xf32>
    %70 = tpu.matmul %64, %4, %cst_33 {dimension_numbers = #tpu.dot_dimension_numbers<[1], [0], [0], [1], [0, 0, 1, 1], [], []>} : vector<8x32xf32>, vector<32x64xf32>, vector<8x64xf32> -> vector<8x64xf32>
    %71 = arith.addf %69, %70 : vector<8x64xf32>
    %72 = vector.extract_strided_slice %71 {offsets = [0, 0], sizes = [8, 32], strides = [1, 1]} : vector<8x64xf32> to vector<8x32xf32>
    %73 = arith.negf %72 : vector<8x32xf32>
    %74 = math.exp %73 : vector<8x32xf32>
    %cst_34 = arith.constant 1.000000e+00 : f32
    %75 = vector.broadcast %cst_34 : f32 to vector<8x32xf32>
    %76 = arith.addf %75, %74 : vector<8x32xf32>
    %77 = arith.divf %75, %76 : vector<8x32xf32>
    %78 = vector.extract_strided_slice %71 {offsets = [0, 32], sizes = [8, 32], strides = [1, 1]} : vector<8x64xf32> to vector<8x32xf32>
    %cst_35 = arith.constant 0.000000e+00 : f32
    %79 = vector.broadcast %cst_35 : f32 to vector<8x32xf32>
    %80 = arith.maximumf %78, %79 : vector<8x32xf32>
    %81 = arith.mulf %77, %64 : vector<8x32xf32>
    %cst_36 = arith.constant 1.000000e+00 : f32
    %82 = vector.broadcast %cst_36 : f32 to vector<8x32xf32>
    %83 = arith.subf %82, %77 : vector<8x32xf32>
    %84 = arith.mulf %83, %80 : vector<8x32xf32>
    %85 = arith.addf %81, %84 : vector<8x32xf32>
    %c3_37 = arith.constant 3 : index
    %c0_38 = arith.constant 0 : index
    %c0_39 = arith.constant 0 : index
    %86 = vector.load %arg3[%c3_37, %c0_38, %c0_39] : memref<16x8x32xf32, #tpu.memory_space<vmem>>, vector<1x8x32xf32>
    %87 = vector.shape_cast %86 : vector<1x8x32xf32> to vector<8x32xf32>
    %88 = vector.shape_cast %85 : vector<8x32xf32> to vector<1x8x32xf32>
    tpu.vector_store %arg3[%c3_37, %c0_38, %c0_39], %88 {strides = array<i32>} : memref<16x8x32xf32, #tpu.memory_space<vmem>>, vector<1x8x32xf32>,
    %c4 = arith.constant 4 : index
    %c0_40 = arith.constant 0 : index
    %c0_41 = arith.constant 0 : index
    %89 = vector.load %arg1[%c4, %c0_40, %c0_41] : memref<16x8x64xf32, #tpu.memory_space<vmem>>, vector<1x8x64xf32>
    %90 = vector.shape_cast %89 : vector<1x8x64xf32> to vector<8x64xf32>
    %cst_42 = arith.constant dense<0.000000e+00> : vector<8x64xf32>
    %91 = tpu.matmul %85, %4, %cst_42 {dimension_numbers = #tpu.dot_dimension_numbers<[1], [0], [0], [1], [0, 0, 1, 1], [], []>} : vector<8x32xf32>, vector<32x64xf32>, vector<8x64xf32> -> vector<8x64xf32>
    %92 = arith.addf %90, %91 : vector<8x64xf32>
    %93 = vector.extract_strided_slice %92 {offsets = [0, 0], sizes = [8, 32], strides = [1, 1]} : vector<8x64xf32> to vector<8x32xf32>
    %94 = arith.negf %93 : vector<8x32xf32>
    %95 = math.exp %94 : vector<8x32xf32>
    %cst_43 = arith.constant 1.000000e+00 : f32
    %96 = vector.broadcast %cst_43 : f32 to vector<8x32xf32>
    %97 = arith.addf %96, %95 : vector<8x32xf32>
    %98 = arith.divf %96, %97 : vector<8x32xf32>
    %99 = vector.extract_strided_slice %92 {offsets = [0, 32], sizes = [8, 32], strides = [1, 1]} : vector<8x64xf32> to vector<8x32xf32>
    %cst_44 = arith.constant 0.000000e+00 : f32
    %100 = vector.broadcast %cst_44 : f32 to vector<8x32xf32>
    %101 = arith.maximumf %99, %100 : vector<8x32xf32>
    %102 = arith.mulf %98, %85 : vector<8x32xf32>
    %cst_45 = arith.constant 1.000000e+00 : f32
    %103 = vector.broadcast %cst_45 : f32 to vector<8x32xf32>
    %104 = arith.subf %103, %98 : vector<8x32xf32>
    %105 = arith.mulf %104, %101 : vector<8x32xf32>
    %106 = arith.addf %102, %105 : vector<8x32xf32>
    %c4_46 = arith.constant 4 : index
    %c0_47 = arith.constant 0 : index
    %c0_48 = arith.constant 0 : index
    %107 = vector.load %arg3[%c4_46, %c0_47, %c0_48] : memref<16x8x32xf32, #tpu.memory_space<vmem>>, vector<1x8x32xf32>
    %108 = vector.shape_cast %107 : vector<1x8x32xf32> to vector<8x32xf32>
    %109 = vector.shape_cast %106 : vector<8x32xf32> to vector<1x8x32xf32>
    tpu.vector_store %arg3[%c4_46, %c0_47, %c0_48], %109 {strides = array<i32>} : memref<16x8x32xf32, #tpu.memory_space<vmem>>, vector<1x8x32xf32>,
    %c5 = arith.constant 5 : index
    %c0_49 = arith.constant 0 : index
    %c0_50 = arith.constant 0 : index
    %110 = vector.load %arg1[%c5, %c0_49, %c0_50] : memref<16x8x64xf32, #tpu.memory_space<vmem>>, vector<1x8x64xf32>
    %111 = vector.shape_cast %110 : vector<1x8x64xf32> to vector<8x64xf32>
    %cst_51 = arith.constant dense<0.000000e+00> : vector<8x64xf32>
    %112 = tpu.matmul %106, %4, %cst_51 {dimension_numbers = #tpu.dot_dimension_numbers<[1], [0], [0], [1], [0, 0, 1, 1], [], []>} : vector<8x32xf32>, vector<32x64xf32>, vector<8x64xf32> -> vector<8x64xf32>
    %113 = arith.addf %111, %112 : vector<8x64xf32>
    %114 = vector.extract_strided_slice %113 {offsets = [0, 0], sizes = [8, 32], strides = [1, 1]} : vector<8x64xf32> to vector<8x32xf32>
    %115 = arith.negf %114 : vector<8x32xf32>
    %116 = math.exp %115 : vector<8x32xf32>
    %cst_52 = arith.constant 1.000000e+00 : f32
    %117 = vector.broadcast %cst_52 : f32 to vector<8x32xf32>
    %118 = arith.addf %117, %116 : vector<8x32xf32>
    %119 = arith.divf %117, %118 : vector<8x32xf32>
    %120 = vector.extract_strided_slice %113 {offsets = [0, 32], sizes = [8, 32], strides = [1, 1]} : vector<8x64xf32> to vector<8x32xf32>
    %cst_53 = arith.constant 0.000000e+00 : f32
    %121 = vector.broadcast %cst_53 : f32 to vector<8x32xf32>
    %122 = arith.maximumf %120, %121 : vector<8x32xf32>
    %123 = arith.mulf %119, %106 : vector<8x32xf32>
    %cst_54 = arith.constant 1.000000e+00 : f32
    %124 = vector.broadcast %cst_54 : f32 to vector<8x32xf32>
    %125 = arith.subf %124, %119 : vector<8x32xf32>
    %126 = arith.mulf %125, %122 : vector<8x32xf32>
    %127 = arith.addf %123, %126 : vector<8x32xf32>
    %c5_55 = arith.constant 5 : index
    %c0_56 = arith.constant 0 : index
    %c0_57 = arith.constant 0 : index
    %128 = vector.load %arg3[%c5_55, %c0_56, %c0_57] : memref<16x8x32xf32, #tpu.memory_space<vmem>>, vector<1x8x32xf32>
    %129 = vector.shape_cast %128 : vector<1x8x32xf32> to vector<8x32xf32>
    %130 = vector.shape_cast %127 : vector<8x32xf32> to vector<1x8x32xf32>
    tpu.vector_store %arg3[%c5_55, %c0_56, %c0_57], %130 {strides = array<i32>} : memref<16x8x32xf32, #tpu.memory_space<vmem>>, vector<1x8x32xf32>,
    %c6 = arith.constant 6 : index
    %c0_58 = arith.constant 0 : index
    %c0_59 = arith.constant 0 : index
    %131 = vector.load %arg1[%c6, %c0_58, %c0_59] : memref<16x8x64xf32, #tpu.memory_space<vmem>>, vector<1x8x64xf32>
    %132 = vector.shape_cast %131 : vector<1x8x64xf32> to vector<8x64xf32>
    %cst_60 = arith.constant dense<0.000000e+00> : vector<8x64xf32>
    %133 = tpu.matmul %127, %4, %cst_60 {dimension_numbers = #tpu.dot_dimension_numbers<[1], [0], [0], [1], [0, 0, 1, 1], [], []>} : vector<8x32xf32>, vector<32x64xf32>, vector<8x64xf32> -> vector<8x64xf32>
    %134 = arith.addf %132, %133 : vector<8x64xf32>
    %135 = vector.extract_strided_slice %134 {offsets = [0, 0], sizes = [8, 32], strides = [1, 1]} : vector<8x64xf32> to vector<8x32xf32>
    %136 = arith.negf %135 : vector<8x32xf32>
    %137 = math.exp %136 : vector<8x32xf32>
    %cst_61 = arith.constant 1.000000e+00 : f32
    %138 = vector.broadcast %cst_61 : f32 to vector<8x32xf32>
    %139 = arith.addf %138, %137 : vector<8x32xf32>
    %140 = arith.divf %138, %139 : vector<8x32xf32>
    %141 = vector.extract_strided_slice %134 {offsets = [0, 32], sizes = [8, 32], strides = [1, 1]} : vector<8x64xf32> to vector<8x32xf32>
    %cst_62 = arith.constant 0.000000e+00 : f32
    %142 = vector.broadcast %cst_62 : f32 to vector<8x32xf32>
    %143 = arith.maximumf %141, %142 : vector<8x32xf32>
    %144 = arith.mulf %140, %127 : vector<8x32xf32>
    %cst_63 = arith.constant 1.000000e+00 : f32
    %145 = vector.broadcast %cst_63 : f32 to vector<8x32xf32>
    %146 = arith.subf %145, %140 : vector<8x32xf32>
    %147 = arith.mulf %146, %143 : vector<8x32xf32>
    %148 = arith.addf %144, %147 : vector<8x32xf32>
    %c6_64 = arith.constant 6 : index
    %c0_65 = arith.constant 0 : index
    %c0_66 = arith.constant 0 : index
    %149 = vector.load %arg3[%c6_64, %c0_65, %c0_66] : memref<16x8x32xf32, #tpu.memory_space<vmem>>, vector<1x8x32xf32>
    %150 = vector.shape_cast %149 : vector<1x8x32xf32> to vector<8x32xf32>
    %151 = vector.shape_cast %148 : vector<8x32xf32> to vector<1x8x32xf32>
    tpu.vector_store %arg3[%c6_64, %c0_65, %c0_66], %151 {strides = array<i32>} : memref<16x8x32xf32, #tpu.memory_space<vmem>>, vector<1x8x32xf32>,
    %c7 = arith.constant 7 : index
    %c0_67 = arith.constant 0 : index
    %c0_68 = arith.constant 0 : index
    %152 = vector.load %arg1[%c7, %c0_67, %c0_68] : memref<16x8x64xf32, #tpu.memory_space<vmem>>, vector<1x8x64xf32>
    %153 = vector.shape_cast %152 : vector<1x8x64xf32> to vector<8x64xf32>
    %cst_69 = arith.constant dense<0.000000e+00> : vector<8x64xf32>
    %154 = tpu.matmul %148, %4, %cst_69 {dimension_numbers = #tpu.dot_dimension_numbers<[1], [0], [0], [1], [0, 0, 1, 1], [], []>} : vector<8x32xf32>, vector<32x64xf32>, vector<8x64xf32> -> vector<8x64xf32>
    %155 = arith.addf %153, %154 : vector<8x64xf32>
    %156 = vector.extract_strided_slice %155 {offsets = [0, 0], sizes = [8, 32], strides = [1, 1]} : vector<8x64xf32> to vector<8x32xf32>
    %157 = arith.negf %156 : vector<8x32xf32>
    %158 = math.exp %157 : vector<8x32xf32>
    %cst_70 = arith.constant 1.000000e+00 : f32
    %159 = vector.broadcast %cst_70 : f32 to vector<8x32xf32>
    %160 = arith.addf %159, %158 : vector<8x32xf32>
    %161 = arith.divf %159, %160 : vector<8x32xf32>
    %162 = vector.extract_strided_slice %155 {offsets = [0, 32], sizes = [8, 32], strides = [1, 1]} : vector<8x64xf32> to vector<8x32xf32>
    %cst_71 = arith.constant 0.000000e+00 : f32
    %163 = vector.broadcast %cst_71 : f32 to vector<8x32xf32>
    %164 = arith.maximumf %162, %163 : vector<8x32xf32>
    %165 = arith.mulf %161, %148 : vector<8x32xf32>
    %cst_72 = arith.constant 1.000000e+00 : f32
    %166 = vector.broadcast %cst_72 : f32 to vector<8x32xf32>
    %167 = arith.subf %166, %161 : vector<8x32xf32>
    %168 = arith.mulf %167, %164 : vector<8x32xf32>
    %169 = arith.addf %165, %168 : vector<8x32xf32>
    %c7_73 = arith.constant 7 : index
    %c0_74 = arith.constant 0 : index
    %c0_75 = arith.constant 0 : index
    %170 = vector.load %arg3[%c7_73, %c0_74, %c0_75] : memref<16x8x32xf32, #tpu.memory_space<vmem>>, vector<1x8x32xf32>
    %171 = vector.shape_cast %170 : vector<1x8x32xf32> to vector<8x32xf32>
    %172 = vector.shape_cast %169 : vector<8x32xf32> to vector<1x8x32xf32>
    tpu.vector_store %arg3[%c7_73, %c0_74, %c0_75], %172 {strides = array<i32>} : memref<16x8x32xf32, #tpu.memory_space<vmem>>, vector<1x8x32xf32>,
    %c8 = arith.constant 8 : index
    %c0_76 = arith.constant 0 : index
    %c0_77 = arith.constant 0 : index
    %173 = vector.load %arg1[%c8, %c0_76, %c0_77] : memref<16x8x64xf32, #tpu.memory_space<vmem>>, vector<1x8x64xf32>
    %174 = vector.shape_cast %173 : vector<1x8x64xf32> to vector<8x64xf32>
    %cst_78 = arith.constant dense<0.000000e+00> : vector<8x64xf32>
    %175 = tpu.matmul %169, %4, %cst_78 {dimension_numbers = #tpu.dot_dimension_numbers<[1], [0], [0], [1], [0, 0, 1, 1], [], []>} : vector<8x32xf32>, vector<32x64xf32>, vector<8x64xf32> -> vector<8x64xf32>
    %176 = arith.addf %174, %175 : vector<8x64xf32>
    %177 = vector.extract_strided_slice %176 {offsets = [0, 0], sizes = [8, 32], strides = [1, 1]} : vector<8x64xf32> to vector<8x32xf32>
    %178 = arith.negf %177 : vector<8x32xf32>
    %179 = math.exp %178 : vector<8x32xf32>
    %cst_79 = arith.constant 1.000000e+00 : f32
    %180 = vector.broadcast %cst_79 : f32 to vector<8x32xf32>
    %181 = arith.addf %180, %179 : vector<8x32xf32>
    %182 = arith.divf %180, %181 : vector<8x32xf32>
    %183 = vector.extract_strided_slice %176 {offsets = [0, 32], sizes = [8, 32], strides = [1, 1]} : vector<8x64xf32> to vector<8x32xf32>
    %cst_80 = arith.constant 0.000000e+00 : f32
    %184 = vector.broadcast %cst_80 : f32 to vector<8x32xf32>
    %185 = arith.maximumf %183, %184 : vector<8x32xf32>
    %186 = arith.mulf %182, %169 : vector<8x32xf32>
    %cst_81 = arith.constant 1.000000e+00 : f32
    %187 = vector.broadcast %cst_81 : f32 to vector<8x32xf32>
    %188 = arith.subf %187, %182 : vector<8x32xf32>
    %189 = arith.mulf %188, %185 : vector<8x32xf32>
    %190 = arith.addf %186, %189 : vector<8x32xf32>
    %c8_82 = arith.constant 8 : index
    %c0_83 = arith.constant 0 : index
    %c0_84 = arith.constant 0 : index
    %191 = vector.load %arg3[%c8_82, %c0_83, %c0_84] : memref<16x8x32xf32, #tpu.memory_space<vmem>>, vector<1x8x32xf32>
    %192 = vector.shape_cast %191 : vector<1x8x32xf32> to vector<8x32xf32>
    %193 = vector.shape_cast %190 : vector<8x32xf32> to vector<1x8x32xf32>
    tpu.vector_store %arg3[%c8_82, %c0_83, %c0_84], %193 {strides = array<i32>} : memref<16x8x32xf32, #tpu.memory_space<vmem>>, vector<1x8x32xf32>,
    %c9 = arith.constant 9 : index
    %c0_85 = arith.constant 0 : index
    %c0_86 = arith.constant 0 : index
    %194 = vector.load %arg1[%c9, %c0_85, %c0_86] : memref<16x8x64xf32, #tpu.memory_space<vmem>>, vector<1x8x64xf32>
    %195 = vector.shape_cast %194 : vector<1x8x64xf32> to vector<8x64xf32>
    %cst_87 = arith.constant dense<0.000000e+00> : vector<8x64xf32>
    %196 = tpu.matmul %190, %4, %cst_87 {dimension_numbers = #tpu.dot_dimension_numbers<[1], [0], [0], [1], [0, 0, 1, 1], [], []>} : vector<8x32xf32>, vector<32x64xf32>, vector<8x64xf32> -> vector<8x64xf32>
    %197 = arith.addf %195, %196 : vector<8x64xf32>
    %198 = vector.extract_strided_slice %197 {offsets = [0, 0], sizes = [8, 32], strides = [1, 1]} : vector<8x64xf32> to vector<8x32xf32>
    %199 = arith.negf %198 : vector<8x32xf32>
    %200 = math.exp %199 : vector<8x32xf32>
    %cst_88 = arith.constant 1.000000e+00 : f32
    %201 = vector.broadcast %cst_88 : f32 to vector<8x32xf32>
    %202 = arith.addf %201, %200 : vector<8x32xf32>
    %203 = arith.divf %201, %202 : vector<8x32xf32>
    %204 = vector.extract_strided_slice %197 {offsets = [0, 32], sizes = [8, 32], strides = [1, 1]} : vector<8x64xf32> to vector<8x32xf32>
    %cst_89 = arith.constant 0.000000e+00 : f32
    %205 = vector.broadcast %cst_89 : f32 to vector<8x32xf32>
    %206 = arith.maximumf %204, %205 : vector<8x32xf32>
    %207 = arith.mulf %203, %190 : vector<8x32xf32>
    %cst_90 = arith.constant 1.000000e+00 : f32
    %208 = vector.broadcast %cst_90 : f32 to vector<8x32xf32>
    %209 = arith.subf %208, %203 : vector<8x32xf32>
    %210 = arith.mulf %209, %206 : vector<8x32xf32>
    %211 = arith.addf %207, %210 : vector<8x32xf32>
    %c9_91 = arith.constant 9 : index
    %c0_92 = arith.constant 0 : index
    %c0_93 = arith.constant 0 : index
    %212 = vector.load %arg3[%c9_91, %c0_92, %c0_93] : memref<16x8x32xf32, #tpu.memory_space<vmem>>, vector<1x8x32xf32>
    %213 = vector.shape_cast %212 : vector<1x8x32xf32> to vector<8x32xf32>
    %214 = vector.shape_cast %211 : vector<8x32xf32> to vector<1x8x32xf32>
    tpu.vector_store %arg3[%c9_91, %c0_92, %c0_93], %214 {strides = array<i32>} : memref<16x8x32xf32, #tpu.memory_space<vmem>>, vector<1x8x32xf32>,
    %c10 = arith.constant 10 : index
    %c0_94 = arith.constant 0 : index
    %c0_95 = arith.constant 0 : index
    %215 = vector.load %arg1[%c10, %c0_94, %c0_95] : memref<16x8x64xf32, #tpu.memory_space<vmem>>, vector<1x8x64xf32>
    %216 = vector.shape_cast %215 : vector<1x8x64xf32> to vector<8x64xf32>
    %cst_96 = arith.constant dense<0.000000e+00> : vector<8x64xf32>
    %217 = tpu.matmul %211, %4, %cst_96 {dimension_numbers = #tpu.dot_dimension_numbers<[1], [0], [0], [1], [0, 0, 1, 1], [], []>} : vector<8x32xf32>, vector<32x64xf32>, vector<8x64xf32> -> vector<8x64xf32>
    %218 = arith.addf %216, %217 : vector<8x64xf32>
    %219 = vector.extract_strided_slice %218 {offsets = [0, 0], sizes = [8, 32], strides = [1, 1]} : vector<8x64xf32> to vector<8x32xf32>
    %220 = arith.negf %219 : vector<8x32xf32>
    %221 = math.exp %220 : vector<8x32xf32>
    %cst_97 = arith.constant 1.000000e+00 : f32
    %222 = vector.broadcast %cst_97 : f32 to vector<8x32xf32>
    %223 = arith.addf %222, %221 : vector<8x32xf32>
    %224 = arith.divf %222, %223 : vector<8x32xf32>
    %225 = vector.extract_strided_slice %218 {offsets = [0, 32], sizes = [8, 32], strides = [1, 1]} : vector<8x64xf32> to vector<8x32xf32>
    %cst_98 = arith.constant 0.000000e+00 : f32
    %226 = vector.broadcast %cst_98 : f32 to vector<8x32xf32>
    %227 = arith.maximumf %225, %226 : vector<8x32xf32>
    %228 = arith.mulf %224, %211 : vector<8x32xf32>
    %cst_99 = arith.constant 1.000000e+00 : f32
    %229 = vector.broadcast %cst_99 : f32 to vector<8x32xf32>
    %230 = arith.subf %229, %224 : vector<8x32xf32>
    %231 = arith.mulf %230, %227 : vector<8x32xf32>
    %232 = arith.addf %228, %231 : vector<8x32xf32>
    %c10_100 = arith.constant 10 : index
    %c0_101 = arith.constant 0 : index
    %c0_102 = arith.constant 0 : index
    %233 = vector.load %arg3[%c10_100, %c0_101, %c0_102] : memref<16x8x32xf32, #tpu.memory_space<vmem>>, vector<1x8x32xf32>
    %234 = vector.shape_cast %233 : vector<1x8x32xf32> to vector<8x32xf32>
    %235 = vector.shape_cast %232 : vector<8x32xf32> to vector<1x8x32xf32>
    tpu.vector_store %arg3[%c10_100, %c0_101, %c0_102], %235 {strides = array<i32>} : memref<16x8x32xf32, #tpu.memory_space<vmem>>, vector<1x8x32xf32>,
    %c11 = arith.constant 11 : index
    %c0_103 = arith.constant 0 : index
    %c0_104 = arith.constant 0 : index
    %236 = vector.load %arg1[%c11, %c0_103, %c0_104] : memref<16x8x64xf32, #tpu.memory_space<vmem>>, vector<1x8x64xf32>
    %237 = vector.shape_cast %236 : vector<1x8x64xf32> to vector<8x64xf32>
    %cst_105 = arith.constant dense<0.000000e+00> : vector<8x64xf32>
    %238 = tpu.matmul %232, %4, %cst_105 {dimension_numbers = #tpu.dot_dimension_numbers<[1], [0], [0], [1], [0, 0, 1, 1], [], []>} : vector<8x32xf32>, vector<32x64xf32>, vector<8x64xf32> -> vector<8x64xf32>
    %239 = arith.addf %237, %238 : vector<8x64xf32>
    %240 = vector.extract_strided_slice %239 {offsets = [0, 0], sizes = [8, 32], strides = [1, 1]} : vector<8x64xf32> to vector<8x32xf32>
    %241 = arith.negf %240 : vector<8x32xf32>
    %242 = math.exp %241 : vector<8x32xf32>
    %cst_106 = arith.constant 1.000000e+00 : f32
    %243 = vector.broadcast %cst_106 : f32 to vector<8x32xf32>
    %244 = arith.addf %243, %242 : vector<8x32xf32>
    %245 = arith.divf %243, %244 : vector<8x32xf32>
    %246 = vector.extract_strided_slice %239 {offsets = [0, 32], sizes = [8, 32], strides = [1, 1]} : vector<8x64xf32> to vector<8x32xf32>
    %cst_107 = arith.constant 0.000000e+00 : f32
    %247 = vector.broadcast %cst_107 : f32 to vector<8x32xf32>
    %248 = arith.maximumf %246, %247 : vector<8x32xf32>
    %249 = arith.mulf %245, %232 : vector<8x32xf32>
    %cst_108 = arith.constant 1.000000e+00 : f32
    %250 = vector.broadcast %cst_108 : f32 to vector<8x32xf32>
    %251 = arith.subf %250, %245 : vector<8x32xf32>
    %252 = arith.mulf %251, %248 : vector<8x32xf32>
    %253 = arith.addf %249, %252 : vector<8x32xf32>
    %c11_109 = arith.constant 11 : index
    %c0_110 = arith.constant 0 : index
    %c0_111 = arith.constant 0 : index
    %254 = vector.load %arg3[%c11_109, %c0_110, %c0_111] : memref<16x8x32xf32, #tpu.memory_space<vmem>>, vector<1x8x32xf32>
    %255 = vector.shape_cast %254 : vector<1x8x32xf32> to vector<8x32xf32>
    %256 = vector.shape_cast %253 : vector<8x32xf32> to vector<1x8x32xf32>
    tpu.vector_store %arg3[%c11_109, %c0_110, %c0_111], %256 {strides = array<i32>} : memref<16x8x32xf32, #tpu.memory_space<vmem>>, vector<1x8x32xf32>,
    %c12 = arith.constant 12 : index
    %c0_112 = arith.constant 0 : index
    %c0_113 = arith.constant 0 : index
    %257 = vector.load %arg1[%c12, %c0_112, %c0_113] : memref<16x8x64xf32, #tpu.memory_space<vmem>>, vector<1x8x64xf32>
    %258 = vector.shape_cast %257 : vector<1x8x64xf32> to vector<8x64xf32>
    %cst_114 = arith.constant dense<0.000000e+00> : vector<8x64xf32>
    %259 = tpu.matmul %253, %4, %cst_114 {dimension_numbers = #tpu.dot_dimension_numbers<[1], [0], [0], [1], [0, 0, 1, 1], [], []>} : vector<8x32xf32>, vector<32x64xf32>, vector<8x64xf32> -> vector<8x64xf32>
    %260 = arith.addf %258, %259 : vector<8x64xf32>
    %261 = vector.extract_strided_slice %260 {offsets = [0, 0], sizes = [8, 32], strides = [1, 1]} : vector<8x64xf32> to vector<8x32xf32>
    %262 = arith.negf %261 : vector<8x32xf32>
    %263 = math.exp %262 : vector<8x32xf32>
    %cst_115 = arith.constant 1.000000e+00 : f32
    %264 = vector.broadcast %cst_115 : f32 to vector<8x32xf32>
    %265 = arith.addf %264, %263 : vector<8x32xf32>
    %266 = arith.divf %264, %265 : vector<8x32xf32>
    %267 = vector.extract_strided_slice %260 {offsets = [0, 32], sizes = [8, 32], strides = [1, 1]} : vector<8x64xf32> to vector<8x32xf32>
    %cst_116 = arith.constant 0.000000e+00 : f32
    %268 = vector.broadcast %cst_116 : f32 to vector<8x32xf32>
    %269 = arith.maximumf %267, %268 : vector<8x32xf32>
    %270 = arith.mulf %266, %253 : vector<8x32xf32>
    %cst_117 = arith.constant 1.000000e+00 : f32
    %271 = vector.broadcast %cst_117 : f32 to vector<8x32xf32>
    %272 = arith.subf %271, %266 : vector<8x32xf32>
    %273 = arith.mulf %272, %269 : vector<8x32xf32>
    %274 = arith.addf %270, %273 : vector<8x32xf32>
    %c12_118 = arith.constant 12 : index
    %c0_119 = arith.constant 0 : index
    %c0_120 = arith.constant 0 : index
    %275 = vector.load %arg3[%c12_118, %c0_119, %c0_120] : memref<16x8x32xf32, #tpu.memory_space<vmem>>, vector<1x8x32xf32>
    %276 = vector.shape_cast %275 : vector<1x8x32xf32> to vector<8x32xf32>
    %277 = vector.shape_cast %274 : vector<8x32xf32> to vector<1x8x32xf32>
    tpu.vector_store %arg3[%c12_118, %c0_119, %c0_120], %277 {strides = array<i32>} : memref<16x8x32xf32, #tpu.memory_space<vmem>>, vector<1x8x32xf32>,
    %c13 = arith.constant 13 : index
    %c0_121 = arith.constant 0 : index
    %c0_122 = arith.constant 0 : index
    %278 = vector.load %arg1[%c13, %c0_121, %c0_122] : memref<16x8x64xf32, #tpu.memory_space<vmem>>, vector<1x8x64xf32>
    %279 = vector.shape_cast %278 : vector<1x8x64xf32> to vector<8x64xf32>
    %cst_123 = arith.constant dense<0.000000e+00> : vector<8x64xf32>
    %280 = tpu.matmul %274, %4, %cst_123 {dimension_numbers = #tpu.dot_dimension_numbers<[1], [0], [0], [1], [0, 0, 1, 1], [], []>} : vector<8x32xf32>, vector<32x64xf32>, vector<8x64xf32> -> vector<8x64xf32>
    %281 = arith.addf %279, %280 : vector<8x64xf32>
    %282 = vector.extract_strided_slice %281 {offsets = [0, 0], sizes = [8, 32], strides = [1, 1]} : vector<8x64xf32> to vector<8x32xf32>
    %283 = arith.negf %282 : vector<8x32xf32>
    %284 = math.exp %283 : vector<8x32xf32>
    %cst_124 = arith.constant 1.000000e+00 : f32
    %285 = vector.broadcast %cst_124 : f32 to vector<8x32xf32>
    %286 = arith.addf %285, %284 : vector<8x32xf32>
    %287 = arith.divf %285, %286 : vector<8x32xf32>
    %288 = vector.extract_strided_slice %281 {offsets = [0, 32], sizes = [8, 32], strides = [1, 1]} : vector<8x64xf32> to vector<8x32xf32>
    %cst_125 = arith.constant 0.000000e+00 : f32
    %289 = vector.broadcast %cst_125 : f32 to vector<8x32xf32>
    %290 = arith.maximumf %288, %289 : vector<8x32xf32>
    %291 = arith.mulf %287, %274 : vector<8x32xf32>
    %cst_126 = arith.constant 1.000000e+00 : f32
    %292 = vector.broadcast %cst_126 : f32 to vector<8x32xf32>
    %293 = arith.subf %292, %287 : vector<8x32xf32>
    %294 = arith.mulf %293, %290 : vector<8x32xf32>
    %295 = arith.addf %291, %294 : vector<8x32xf32>
    %c13_127 = arith.constant 13 : index
    %c0_128 = arith.constant 0 : index
    %c0_129 = arith.constant 0 : index
    %296 = vector.load %arg3[%c13_127, %c0_128, %c0_129] : memref<16x8x32xf32, #tpu.memory_space<vmem>>, vector<1x8x32xf32>
    %297 = vector.shape_cast %296 : vector<1x8x32xf32> to vector<8x32xf32>
    %298 = vector.shape_cast %295 : vector<8x32xf32> to vector<1x8x32xf32>
    tpu.vector_store %arg3[%c13_127, %c0_128, %c0_129], %298 {strides = array<i32>} : memref<16x8x32xf32, #tpu.memory_space<vmem>>, vector<1x8x32xf32>,
    %c14 = arith.constant 14 : index
    %c0_130 = arith.constant 0 : index
    %c0_131 = arith.constant 0 : index
    %299 = vector.load %arg1[%c14, %c0_130, %c0_131] : memref<16x8x64xf32, #tpu.memory_space<vmem>>, vector<1x8x64xf32>
    %300 = vector.shape_cast %299 : vector<1x8x64xf32> to vector<8x64xf32>
    %cst_132 = arith.constant dense<0.000000e+00> : vector<8x64xf32>
    %301 = tpu.matmul %295, %4, %cst_132 {dimension_numbers = #tpu.dot_dimension_numbers<[1], [0], [0], [1], [0, 0, 1, 1], [], []>} : vector<8x32xf32>, vector<32x64xf32>, vector<8x64xf32> -> vector<8x64xf32>
    %302 = arith.addf %300, %301 : vector<8x64xf32>
    %303 = vector.extract_strided_slice %302 {offsets = [0, 0], sizes = [8, 32], strides = [1, 1]} : vector<8x64xf32> to vector<8x32xf32>
    %304 = arith.negf %303 : vector<8x32xf32>
    %305 = math.exp %304 : vector<8x32xf32>
    %cst_133 = arith.constant 1.000000e+00 : f32
    %306 = vector.broadcast %cst_133 : f32 to vector<8x32xf32>
    %307 = arith.addf %306, %305 : vector<8x32xf32>
    %308 = arith.divf %306, %307 : vector<8x32xf32>
    %309 = vector.extract_strided_slice %302 {offsets = [0, 32], sizes = [8, 32], strides = [1, 1]} : vector<8x64xf32> to vector<8x32xf32>
    %cst_134 = arith.constant 0.000000e+00 : f32
    %310 = vector.broadcast %cst_134 : f32 to vector<8x32xf32>
    %311 = arith.maximumf %309, %310 : vector<8x32xf32>
    %312 = arith.mulf %308, %295 : vector<8x32xf32>
    %cst_135 = arith.constant 1.000000e+00 : f32
    %313 = vector.broadcast %cst_135 : f32 to vector<8x32xf32>
    %314 = arith.subf %313, %308 : vector<8x32xf32>
    %315 = arith.mulf %314, %311 : vector<8x32xf32>
    %316 = arith.addf %312, %315 : vector<8x32xf32>
    %c14_136 = arith.constant 14 : index
    %c0_137 = arith.constant 0 : index
    %c0_138 = arith.constant 0 : index
    %317 = vector.load %arg3[%c14_136, %c0_137, %c0_138] : memref<16x8x32xf32, #tpu.memory_space<vmem>>, vector<1x8x32xf32>
    %318 = vector.shape_cast %317 : vector<1x8x32xf32> to vector<8x32xf32>
    %319 = vector.shape_cast %316 : vector<8x32xf32> to vector<1x8x32xf32>
    tpu.vector_store %arg3[%c14_136, %c0_137, %c0_138], %319 {strides = array<i32>} : memref<16x8x32xf32, #tpu.memory_space<vmem>>, vector<1x8x32xf32>,
    %c15 = arith.constant 15 : index
    %c0_139 = arith.constant 0 : index
    %c0_140 = arith.constant 0 : index
    %320 = vector.load %arg1[%c15, %c0_139, %c0_140] : memref<16x8x64xf32, #tpu.memory_space<vmem>>, vector<1x8x64xf32>
    %321 = vector.shape_cast %320 : vector<1x8x64xf32> to vector<8x64xf32>
    %cst_141 = arith.constant dense<0.000000e+00> : vector<8x64xf32>
    %322 = tpu.matmul %316, %4, %cst_141 {dimension_numbers = #tpu.dot_dimension_numbers<[1], [0], [0], [1], [0, 0, 1, 1], [], []>} : vector<8x32xf32>, vector<32x64xf32>, vector<8x64xf32> -> vector<8x64xf32>
    %323 = arith.addf %321, %322 : vector<8x64xf32>
    %324 = vector.extract_strided_slice %323 {offsets = [0, 0], sizes = [8, 32], strides = [1, 1]} : vector<8x64xf32> to vector<8x32xf32>
    %325 = arith.negf %324 : vector<8x32xf32>
    %326 = math.exp %325 : vector<8x32xf32>
    %cst_142 = arith.constant 1.000000e+00 : f32
    %327 = vector.broadcast %cst_142 : f32 to vector<8x32xf32>
    %328 = arith.addf %327, %326 : vector<8x32xf32>
    %329 = arith.divf %327, %328 : vector<8x32xf32>
    %330 = vector.extract_strided_slice %323 {offsets = [0, 32], sizes = [8, 32], strides = [1, 1]} : vector<8x64xf32> to vector<8x32xf32>
    %cst_143 = arith.constant 0.000000e+00 : f32
    %331 = vector.broadcast %cst_143 : f32 to vector<8x32xf32>
    %332 = arith.maximumf %330, %331 : vector<8x32xf32>
    %333 = arith.mulf %329, %316 : vector<8x32xf32>
    %cst_144 = arith.constant 1.000000e+00 : f32
    %334 = vector.broadcast %cst_144 : f32 to vector<8x32xf32>
    %335 = arith.subf %334, %329 : vector<8x32xf32>
    %336 = arith.mulf %335, %332 : vector<8x32xf32>
    %337 = arith.addf %333, %336 : vector<8x32xf32>
    %c15_145 = arith.constant 15 : index
    %c0_146 = arith.constant 0 : index
    %c0_147 = arith.constant 0 : index
    %338 = vector.load %arg3[%c15_145, %c0_146, %c0_147] : memref<16x8x32xf32, #tpu.memory_space<vmem>>, vector<1x8x32xf32>
    %339 = vector.shape_cast %338 : vector<1x8x32xf32> to vector<8x32xf32>
    %340 = vector.shape_cast %337 : vector<8x32xf32> to vector<1x8x32xf32>
    tpu.vector_store %arg3[%c15_145, %c0_146, %c0_147], %340 {strides = array<i32>} : memref<16x8x32xf32, #tpu.memory_space<vmem>>, vector<1x8x32xf32>,
    %c0_148 = arith.constant 0 : index
    %c0_149 = arith.constant 0 : index
    %341 = vector.load %arg4[%c0_148, %c0_149] : memref<8x32xf32, #tpu.memory_space<vmem>>, vector<8x32xf32>
    tpu.vector_store %arg4[%c0_148, %c0_149], %337 {strides = array<i32>} : memref<8x32xf32, #tpu.memory_space<vmem>>, vector<8x32xf32>,
    return
  }
  func.func @transform_0(%arg0: i32) -> (i32, i32, i32) {
    %c0_i32 = arith.constant 0 : i32
    %c0_i32_0 = arith.constant 0 : i32
    %c0_i32_1 = arith.constant 0 : i32
    return %arg0, %c0_i32, %c0_i32_0 : i32, i32, i32
  }
  func.func @transform_1(%arg0: i32) -> (i32, i32) {
    %c0_i32 = arith.constant 0 : i32
    %c0_i32_0 = arith.constant 0 : i32
    %c0_i32_1 = arith.constant 0 : i32
    return %c0_i32, %c0_i32_0 : i32, i32
  }
  func.func @transform_2(%arg0: i32) -> (i32, i32, i32) {
    %c0_i32 = arith.constant 0 : i32
    %c0_i32_0 = arith.constant 0 : i32
    %c0_i32_1 = arith.constant 0 : i32
    return %arg0, %c0_i32, %c0_i32_0 : i32, i32, i32
  }
}

</mosaic_0001>

<llo_original>
// kernel: _run_ligru_direction.1
$region0: #{_run_ligru_direction.1}
  #allocation0 [shape = 'u32[]', space=smem, size = 0x4, offset = 0x4, fixed_abs, tag = 'smem constant byte address 0x4 - core index']
  #allocation1 [shape = 'u32[144,128]{1,0:T(1,128)}', space=vmem, size = 0x12000, scoped, tag = 'internal scratch']
  #allocation2 [shape = 'f32[8,32]{1,0:T(8,128)}', space=vmem, size = 0x1000, scoped, tag = 'scratch operand']
  %s0 = inlined_call_operand.vmem [shape: f32[32,8,64], index: 0, kind: input, shape index: {}]
  %s1 = inlined_call_operand.vmem [shape: f32[32,64], index: 1, kind: input, shape index: {}]
  %s2 = inlined_call_operand.vmem [shape: f32[32,8,32], index: 2, kind: output, shape index: {}]
  %s3 = sld [smem:[#allocation0]]
  $region45: #{_run_ligru_direction.1} parent=0
    _
  %s5 = ssub.s32 1, %s3
  %s6 = scalar_select 0, %s5, %s3
  loop: start=0, step=1, limit=4
  $region2: #{_run_ligru_direction.1} parent=0 // loop_pre_header
    _
  $region3: #{_run_ligru_direction.1} parent=0 // loop_header
    %s8 = sphi 0, %s12
    %p9 = scmp.ge.s32.totalorder %s8, 4
    %s18 = sphi 0, %s20
    %s21 = sphi 0, %s18
    %s22 = sphi 0, %s21
    %s38 = sphi 0, %s22
    %s42 = sphi 0, %s42
    %s44 = sphi 0, %s42
    %s45 = sphi 0, %s44
    %s59 = sphi 0, %s45
    %s65 = sphi 0, %s67
    %s68 = sphi 0, %s65
    %s69 = sphi 0, %s68
    %s85 = sphi 0, %s69
  $region4: #{_run_ligru_direction.1} parent=0 // loop_header_branch
    %11 = sbr.rel (%p9) target = $region8
  $region5: #{_run_ligru_direction.1} parent=0 // loop_body
    %s13 = ssub.s32 %s8, 1
    %s14 = ssub.s32 %s8, 2
    %s15 = sadd.s32 %s8, 1
    %s16 = ssub.s32 %s8, %s15
    %p17 = scmp.eq.s32.totalorder %s16, 0
    %s19 = sadd.s32 %s18, 1
    %s20 = scalar_select %p17, %s18, %s19
    %p23 = pneg %p17
    %p24 = scmp.eq.s32.totalorder %s8, 1
    %p25 = por %p23, %p24
    %p26 = scmp.ne.s32.totalorder %s18, %s21
    %p27 = scmp.eq.s32.totalorder %s8, 0
    %p28 = por %p26, %p27
    %p29 = scmp.ne.s32.totalorder %s18, %s21
    %p30 = scmp.eq.s32.totalorder %s13, 1
    %p31 = por %p29, %p30
    %p32 = scmp.ne.s32.totalorder %s21, %s22
    %p33 = scmp.eq.s32.totalorder %s13, 0
    %p34 = por %p32, %p33
    %p35 = scmp.ne.s32.totalorder %s21, %s22
    %p36 = scmp.eq.s32.totalorder %s14, 1
    %p37 = por %p35, %p36
    %p39 = scmp.ne.s32.totalorder %s22, %s38
    %p40 = scmp.eq.s32.totalorder %s14, 0
    %p41 = por %p39, %p40
    %s43 = sadd.s32 %s42, 1
    %p46 = scmp.eq.s32.totalorder %s8, 1
    %p47 = scmp.ne.s32.totalorder %s42, %s44
    %p48 = scmp.eq.s32.totalorder %s8, 0
    %p49 = por %p47, %p48
    %p50 = scmp.ne.s32.totalorder %s42, %s44
    %p51 = scmp.eq.s32.totalorder %s13, 1
    %p52 = por %p50, %p51
    %p53 = scmp.ne.s32.totalorder %s44, %s45
    %p54 = scmp.eq.s32.totalorder %s13, 0
    %p55 = por %p53, %p54
    %p56 = scmp.ne.s32.totalorder %s44, %s45
    %p57 = scmp.eq.s32.totalorder %s14, 1
    %p58 = por %p56, %p57
    %p60 = scmp.ne.s32.totalorder %s45, %s59
    %p61 = scmp.eq.s32.totalorder %s14, 0
    %p62 = por %p60, %p61
    %s63 = ssub.s32 %s8, %s15
    %p64 = scmp.eq.s32.totalorder %s63, 0
    %s66 = sadd.s32 %s65, 1
    %s67 = scalar_select %p64, %s65, %s66
    %p70 = pneg %p64
    %p71 = scmp.eq.s32.totalorder %s8, 1
    %p72 = por %p70, %p71
    %p73 = scmp.ne.s32.totalorder %s65, %s68
    %p74 = scmp.eq.s32.totalorder %s8, 0
    %p75 = por %p73, %p74
    %p76 = scmp.ne.s32.totalorder %s65, %s68
    %p77 = scmp.eq.s32.totalorder %s13, 1
    %p78 = por %p76, %p77
    %p79 = scmp.ne.s32.totalorder %s68, %s69
    %p80 = scmp.eq.s32.totalorder %s13, 0
    %p81 = por %p79, %p80
    %p82 = scmp.ne.s32.totalorder %s68, %s69
    %p83 = scmp.eq.s32.totalorder %s14, 1
    %p84 = por %p82, %p83
    %p86 = scmp.ne.s32.totalorder %s69, %s85
    %p87 = scmp.eq.s32.totalorder %s14, 0
    %p88 = por %p86, %p87
    %p89 = scmp.le.s32.totalorder 1, %s8
    %p90 = scmp.lt.s32.totalorder %s8, 3
    %p91 = pnand %p89, %p90
    %p92 = pneg %p91
    // Predicated region
    $region9: #{_run_ligru_direction.1} parent=5 // pred_check
      _
    $region10: #{_run_ligru_direction.1} parent=5 // pred_check_branch
      %94 = sbr.rel (%p91) target = $region12
    $region11: #{_run_ligru_direction.1} parent=5 // pred_region
      %s95 = ssub.s32 %s8, 1
      // Predicated region
      $region13: #{_run_ligru_direction.1} parent=11 // pred_check
        %p96 = pneg %p55
      $region14: #{_run_ligru_direction.1} parent=11 // pred_check_branch
        %98 = sbr.rel (%p96) target = $region16
      $region15: #{_run_ligru_direction.1} parent=11 // pred_region
        _
      $region16: #{_run_ligru_direction.1} parent=11 // pred_fallthru
        _
    $region12: #{_run_ligru_direction.1} parent=5 // pred_fallthru
      _
    %p99 = scmp.lt.s32.totalorder %s8, 2
    // Predicated region
    $region17: #{_run_ligru_direction.1} parent=5 // pred_check
      %p100 = pneg %p99
    $region18: #{_run_ligru_direction.1} parent=5 // pred_check_branch
      %102 = sbr.rel (%p100) target = $region20
    $region19: #{_run_ligru_direction.1} parent=5 // pred_region
      // Predicated region
      $region21: #{_run_ligru_direction.1} parent=19 // pred_check
        %p103 = pneg %p28
      $region22: #{_run_ligru_direction.1} parent=19 // pred_check_branch
        %105 = sbr.rel (%p103) target = $region24
      $region23: #{_run_ligru_direction.1} parent=19 // pred_region
        %s106 = smul.u32 16, %s8
        %p107 = scmp.lt.s32.totalorder %s106, 31
        %s108 = scalar_select %p107, %s106, 31
        %s109 = smul.addr %s108, 8
        %s110 = scalar_lea.vmem %s0, %s109
        %s111 = smul.u32 16, %s8
      $region24: #{_run_ligru_direction.1} parent=19 // pred_fallthru
        _
    $region20: #{_run_ligru_direction.1} parent=5 // pred_fallthru
      _
    %p112 = scmp.le.s32.totalorder 1, %s8
    %p113 = scmp.lt.s32.totalorder %s8, 3
    %p114 = pnand %p112, %p113
    %p115 = pneg %p114
    // Predicated region
    $region25: #{_run_ligru_direction.1} parent=5 // pred_check
      _
    $region26: #{_run_ligru_direction.1} parent=5 // pred_check_branch
      %117 = sbr.rel (%p114) target = $region28
    $region27: #{_run_ligru_direction.1} parent=5 // pred_region
      %s118 = ssub.s32 %s8, 1
      %s119 = smul.u32 16, %s13
      %p120 = scmp.lt.s32.totalorder %s119, 31
      %s121 = scalar_select %p120, %s119, 31
      %s122 = smul.addr %s121, 8
      %s123 = scalar_lea.vmem %s0, %s122
      %p124 = pneg %p34
      %p125 = pneg %p31
      %p126 = pneg %p55
      %p127 = pneg %p52
      %p128 = pneg %p81
      %p129 = pneg %p78
      %s130 = smul.u32 16, %s13
      %p131 = scmp.lt.s32.totalorder %s130, 31
      %s132 = scalar_select %p131, %s130, 31
      %s133 = smul.addr %s132, 8
      %s134 = scalar_lea.vmem %s2, %s133
      %s135 = smul.u32 16, %s13
      %p136 = scmp.lt.s32.totalorder %s135, 31
      %s137 = scalar_select %p136, %s135, 31
      %s138 = smul.addr %s137, 8
      %s139 = scalar_lea.vmem %s0, %s138
      %s140 = smul.u32 16, %s13
      %s141 = smul.u32 16, %s13
      %p142 = scmp.lt.s32.totalorder %s141, 31
      %s143 = scalar_select %p142, %s141, 31
      %s144 = smul.addr %s143, 8
      %s145 = scalar_lea.vmem %s2, %s144
      %s146 = smul.u32 16, %s13
      %p147 = scmp.eq.s32.totalorder %s13, 0
      // Predicated region
      $region29: #{_run_ligru_direction.1} parent=27 // pred_check
        %p148 = pneg %p147
      $region30: #{_run_ligru_direction.1} parent=27 // pred_check_branch
        %150 = sbr.rel (%p148) target = $region32
      $region31: #{_run_ligru_direction.1} parent=27 // pred_region
        %vm151 = vcmask 261120
        %152 = vst.msk [vmem:[#allocation2] sm:$0xff] %vm151, 0.0
      $region32: #{_run_ligru_direction.1} parent=27 // pred_fallthru
        _
      %v153 = vld [vmem:[#allocation2] sm:$0xff]
      %v154 = vld [vmem:[%s1] sm:$0xff]
      %v155 = vld [vmem:[%s1 + $0x8] sm:$0xff]
      %v156 = vld [vmem:[%s1 + $0x10] sm:$0xff]
      %v157 = vld [vmem:[%s1 + $0x18] sm:$0xff]
      %v158 = vld [vmem:[%s139] sm:$0xff]
      %vm159 = vcmask 261120
      %v161 = vsel %vm159, %v153, 0
      %163 = vmatprep.subr.mxu0 0.0
      %164 = vmatpush1.msra.mxu0 0.0
      %165 = vmatprep.subr.mxu0 0.0
      %166 = vmatpush1.msra.mxu0 0.0
      %167 = vmatprep.subr.mxu0 0.0
      %168 = vmatpush1.msra.mxu0 0.0
      %169 = vmatprep.subr.mxu0 0.0
      %170 = vmatpush1.msra.mxu0 0.0
      %171 = vmatprep.subr.mxu0 0.0
      %172 = vmatpush1.msra.mxu0 0.0
      %173 = vmatprep.subr.mxu0 0.0
      %174 = vmatpush1.msra.mxu0 0.0
      %175 = vmatprep.subr.mxu0 0.0
      %176 = vmatpush1.msra.mxu0 0.0
      %177 = vmatprep.subr.mxu0 0.0
      %178 = vmatpush1.msra.mxu0 0.0
      %179 = vmatprep.subr.mxu0 0.0
      %180 = vmatpush1.msra.mxu0 0.0
      %181 = vmatprep.subr.mxu0 0.0
      %182 = vmatpush1.msra.mxu0 0.0
      %183 = vmatprep.subr.mxu0 0.0
      %184 = vmatpush1.msra.mxu0 0.0
      %185 = vmatprep.subr.mxu0 0.0
      %186 = vmatpush1.msra.mxu0 0.0
      %187 = vmatprep.subr.mxu0 0.0
      %188 = vmatpush1.msra.mxu0 %v157
      %189 = vmatprep.subr.mxu0 0.0
      %190 = vmatpush1.msra.mxu0 %v156
      %191 = vmatprep.subr.mxu0 0.0
      %192 = vmatpush1.msra.mxu0 %v155
      %193 = vmatprep.subr.mxu0 0.0
      %194 = vmatpush1.msra.mxu0 %v154
      %195 = vmatprep.subr.mxu0 0.0
      %196 = vmatpush2.msra.mxu0 0.0
      %197 = vmatprep.subr.mxu0 0.0
      %198 = vmatpush2.msra.mxu0 0.0
      %199 = vmatprep.subr.mxu0 0.0
      %200 = vmatpush2.msra.mxu0 0.0
      %201 = vmatprep.subr.mxu0 0.0
      %202 = vmatpush2.msra.mxu0 0.0
      %203 = vmatprep.subr.mxu0 0.0
      %204 = vmatpush2.msra.mxu0 0.0
      %205 = vmatprep.subr.mxu0 0.0
      %206 = vmatpush2.msra.mxu0 0.0
      %207 = vmatprep.subr.mxu0 0.0
      %208 = vmatpush2.msra.mxu0 0.0
      %209 = vmatprep.subr.mxu0 0.0
      %210 = vmatpush2.msra.mxu0 0.0
      %211 = vmatprep.subr.mxu0 0.0
      %212 = vmatpush2.msra.mxu0 0.0
      %213 = vmatprep.subr.mxu0 0.0
      %214 = vmatpush2.msra.mxu0 0.0
      %215 = vmatprep.subr.mxu0 0.0
      %216 = vmatpush2.msra.mxu0 0.0
      %217 = vmatprep.subr.mxu0 0.0
      %218 = vmatpush2.msra.mxu0 0.0
      %219 = vmatprep.subr.mxu0 0.0
      %220 = vmatpush2.msra.mxu0 0.0
      %221 = vmatprep.subr.mxu0 0.0
      %222 = vmatpush2.msra.mxu0 0.0
      %223 = vmatprep.subr.mxu0 0.0
      %224 = vmatpush2.msra.mxu0 0.0
      %225 = vmatprep.subr.mxu0 0.0
      %226 = vmatpush2.msra.mxu0 0.0
      %227 = vmatprep.mubr.f32.mxu0 0.0
      %228 = vmatmul.mubr.f32.gmra.mxu0 %v161
      %v229 = vpop.f32.mrf.mxu0
      %v230 = vadd.f32 0.0, %v229
      %v231 = vpop.f32.mrf.mxu0
      %232 = vdwg.mxu0
      %v233 = vadd.f32 %v158, %v230
      %v234 = vxor.u32 %v233, 2147483648
      %v235 = vmul.f32 %v234, 1.442695
      %v236 = vpow.pop %v235
      %v237 = vadd.f32 %v236, 1.0
      %v238 = vrcp.pop %v237
      %v239 = vmul.f32 1.0, %v238
      %v240 = vmax.f32 %v233, 0.0
      %v241 = vmul.f32 %v239, %v153
      %v242 = vsub.f32 1.0, %v239
      %244 = vrot.lane.b32.xlu0 %v240, 96
      %v245 = vpop.permute.xlu0 %244
      %v247 = vmul.f32 %v242, %v245
      %v248 = vadd.f32 %v241, %v247
      %249 = vst.msk [vmem:[%s145] sm:$0xff] %vm159, %v248
      %s250 = scalar_lea.vmem %s139, 8
      %v251 = vld [vmem:[%s250] sm:$0xff]
      %v253 = vsel %vm159, %v248, 0
      %255 = vmatprep.subr.mxu0 0.0
      %256 = vmatpush1.msra.mxu0 0.0
      %257 = vmatprep.subr.mxu0 0.0
      %258 = vmatpush1.msra.mxu0 0.0
      %259 = vmatprep.subr.mxu0 0.0
      %260 = vmatpush1.msra.mxu0 0.0
      %261 = vmatprep.subr.mxu0 0.0
      %262 = vmatpush1.msra.mxu0 0.0
      %263 = vmatprep.subr.mxu0 0.0
      %264 = vmatpush1.msra.mxu0 0.0
      %265 = vmatprep.subr.mxu0 0.0
      %266 = vmatpush1.msra.mxu0 0.0
      %267 = vmatprep.subr.mxu0 0.0
      %268 = vmatpush1.msra.mxu0 0.0
      %269 = vmatprep.subr.mxu0 0.0
      %270 = vmatpush1.msra.mxu0 0.0
      %271 = vmatprep.subr.mxu0 0.0
      %272 = vmatpush1.msra.mxu0 0.0
      %273 = vmatprep.subr.mxu0 0.0
      %274 = vmatpush1.msra.mxu0 0.0
      %275 = vmatprep.subr.mxu0 0.0
      %276 = vmatpush1.msra.mxu0 0.0
      %277 = vmatprep.subr.mxu0 0.0
      %278 = vmatpush1.msra.mxu0 0.0
      %279 = vmatprep.subr.mxu0 0.0
      %280 = vmatpush1.msra.mxu0 %v157
      %281 = vmatprep.subr.mxu0 0.0
      %282 = vmatpush1.msra.mxu0 %v156
      %283 = vmatprep.subr.mxu0 0.0
      %284 = vmatpush1.msra.mxu0 %v155
      %285 = vmatprep.subr.mxu0 0.0
      %286 = vmatpush1.msra.mxu0 %v154
      %287 = vmatprep.subr.mxu0 0.0
      %288 = vmatpush2.msra.mxu0 0.0
      %289 = vmatprep.subr.mxu0 0.0
      %290 = vmatpush2.msra.mxu0 0.0
      %291 = vmatprep.subr.mxu0 0.0
      %292 = vmatpush2.msra.mxu0 0.0
      %293 = vmatprep.subr.mxu0 0.0
      %294 = vmatpush2.msra.mxu0 0.0
      %295 = vmatprep.subr.mxu0 0.0
      %296 = vmatpush2.msra.mxu0 0.0
      %297 = vmatprep.subr.mxu0 0.0
      %298 = vmatpush2.msra.mxu0 0.0
      %299 = vmatprep.subr.mxu0 0.0
      %300 = vmatpush2.msra.mxu0 0.0
      %301 = vmatprep.subr.mxu0 0.0
      %302 = vmatpush2.msra.mxu0 0.0
      %303 = vmatprep.subr.mxu0 0.0
      %304 = vmatpush2.msra.mxu0 0.0
      %305 = vmatprep.subr.mxu0 0.0
      %306 = vmatpush2.msra.mxu0 0.0
      %307 = vmatprep.subr.mxu0 0.0
      %308 = vmatpush2.msra.mxu0 0.0
      %309 = vmatprep.subr.mxu0 0.0
      %310 = vmatpush2.msra.mxu0 0.0
      %311 = vmatprep.subr.mxu0 0.0
      %312 = vmatpush2.msra.mxu0 0.0
      %313 = vmatprep.subr.mxu0 0.0
      %314 = vmatpush2.msra.mxu0 0.0
      %315 = vmatprep.subr.mxu0 0.0
      %316 = vmatpush2.msra.mxu0 0.0
      %317 = vmatprep.subr.mxu0 0.0
      %318 = vmatpush2.msra.mxu0 0.0
      %319 = vmatprep.mubr.f32.mxu0 0.0
      %320 = vmatmul.mubr.f32.gmra.mxu0 %v253
      %v321 = vpop.f32.mrf.mxu0
      %v322 = vadd.f32 0.0, %v321
      %v323 = vpop.f32.mrf.mxu0
      %324 = vdwg.mxu0
      %v325 = vadd.f32 %v251, %v322
      %v326 = vxor.u32 %v325, 2147483648
      %v327 = vmul.f32 %v326, 1.442695
      %v328 = vpow.pop %v327
      %v329 = vadd.f32 %v328, 1.0
      %v330 = vrcp.pop %v329
      %v331 = vmul.f32 1.0, %v330
      %v332 = vmax.f32 %v325, 0.0
      %v333 = vmul.f32 %v331, %v248
      %v334 = vsub.f32 1.0, %v331
      %336 = vrot.lane.b32.xlu0 %v332, 96
      %v337 = vpop.permute.xlu0 %336
      %v339 = vmul.f32 %v334, %v337
      %v340 = vadd.f32 %v333, %v339
      %s341 = scalar_lea.vmem %s145, 8
      %342 = vst.msk [vmem:[%s341] sm:$0xff] %vm159, %v340
      %s343 = scalar_lea.vmem %s139, 16
      %v344 = vld [vmem:[%s343] sm:$0xff]
      %v346 = vsel %vm159, %v340, 0
      %348 = vmatprep.subr.mxu0 0.0
      %349 = vmatpush1.msra.mxu0 0.0
      %350 = vmatprep.subr.mxu0 0.0
      %351 = vmatpush1.msra.mxu0 0.0
      %352 = vmatprep.subr.mxu0 0.0
      %353 = vmatpush1.msra.mxu0 0.0
      %354 = vmatprep.subr.mxu0 0.0
      %355 = vmatpush1.msra.mxu0 0.0
      %356 = vmatprep.subr.mxu0 0.0
      %357 = vmatpush1.msra.mxu0 0.0
      %358 = vmatprep.subr.mxu0 0.0
      %359 = vmatpush1.msra.mxu0 0.0
      %360 = vmatprep.subr.mxu0 0.0
      %361 = vmatpush1.msra.mxu0 0.0
      %362 = vmatprep.subr.mxu0 0.0
      %363 = vmatpush1.msra.mxu0 0.0
      %364 = vmatprep.subr.mxu0 0.0
      %365 = vmatpush1.msra.mxu0 0.0
      %366 = vmatprep.subr.mxu0 0.0
      %367 = vmatpush1.msra.mxu0 0.0
      %368 = vmatprep.subr.mxu0 0.0
      %369 = vmatpush1.msra.mxu0 0.0
      %370 = vmatprep.subr.mxu0 0.0
      %371 = vmatpush1.msra.mxu0 0.0
      %372 = vmatprep.subr.mxu0 0.0
      %373 = vmatpush1.msra.mxu0 %v157
      %374 = vmatprep.subr.mxu0 0.0
      %375 = vmatpush1.msra.mxu0 %v156
      %376 = vmatprep.subr.mxu0 0.0
      %377 = vmatpush1.msra.mxu0 %v155
      %378 = vmatprep.subr.mxu0 0.0
      %379 = vmatpush1.msra.mxu0 %v154
      %380 = vmatprep.subr.mxu0 0.0
      %381 = vmatpush2.msra.mxu0 0.0
      %382 = vmatprep.subr.mxu0 0.0
      %383 = vmatpush2.msra.mxu0 0.0
      %384 = vmatprep.subr.mxu0 0.0
      %385 = vmatpush2.msra.mxu0 0.0
      %386 = vmatprep.subr.mxu0 0.0
      %387 = vmatpush2.msra.mxu0 0.0
      %388 = vmatprep.subr.mxu0 0.0
      %389 = vmatpush2.msra.mxu0 0.0
      %390 = vmatprep.subr.mxu0 0.0
      %391 = vmatpush2.msra.mxu0 0.0
      %392 = vmatprep.subr.mxu0 0.0
      %393 = vmatpush2.msra.mxu0 0.0
      %394 = vmatprep.subr.mxu0 0.0
      %395 = vmatpush2.msra.mxu0 0.0
      %396 = vmatprep.subr.mxu0 0.0
      %397 = vmatpush2.msra.mxu0 0.0
      %398 = vmatprep.subr.mxu0 0.0
      %399 = vmatpush2.msra.mxu0 0.0
      %400 = vmatprep.subr.mxu0 0.0
      %401 = vmatpush2.msra.mxu0 0.0
      %402 = vmatprep.subr.mxu0 0.0
      %403 = vmatpush2.msra.mxu0 0.0
      %404 = vmatprep.subr.mxu0 0.0
      %405 = vmatpush2.msra.mxu0 0.0
      %406 = vmatprep.subr.mxu0 0.0
      %407 = vmatpush2.msra.mxu0 0.0
      %408 = vmatprep.subr.mxu0 0.0
      %409 = vmatpush2.msra.mxu0 0.0
      %410 = vmatprep.subr.mxu0 0.0
      %411 = vmatpush2.msra.mxu0 0.0
      %412 = vmatprep.mubr.f32.mxu0 0.0
      %413 = vmatmul.mubr.f32.gmra.mxu0 %v346
      %v414 = vpop.f32.mrf.mxu0
      %v415 = vadd.f32 0.0, %v414
      %v416 = vpop.f32.mrf.mxu0
      %417 = vdwg.mxu0
      %v418 = vadd.f32 %v344, %v415
      %v419 = vxor.u32 %v418, 2147483648
      %v420 = vmul.f32 %v419, 1.442695
      %v421 = vpow.pop %v420
      %v422 = vadd.f32 %v421, 1.0
      %v423 = vrcp.pop %v422
      %v424 = vmul.f32 1.0, %v423
      %v425 = vmax.f32 %v418, 0.0
      %v426 = vmul.f32 %v424, %v340
      %v427 = vsub.f32 1.0, %v424
      %429 = vrot.lane.b32.xlu0 %v425, 96
      %v430 = vpop.permute.xlu0 %429
      %v432 = vmul.f32 %v427, %v430
      %v433 = vadd.f32 %v426, %v432
      %s434 = scalar_lea.vmem %s145, 16
      %435 = vst.msk [vmem:[%s434] sm:$0xff] %vm159, %v433
      %s436 = scalar_lea.vmem %s139, 24
      %v437 = vld [vmem:[%s436] sm:$0xff]
      %v439 = vsel %vm159, %v433, 0
      %441 = vmatprep.subr.mxu0 0.0
      %442 = vmatpush1.msra.mxu0 0.0
      %443 = vmatprep.subr.mxu0 0.0
      %444 = vmatpush1.msra.mxu0 0.0
      %445 = vmatprep.subr.mxu0 0.0
      %446 = vmatpush1.msra.mxu0 0.0
      %447 = vmatprep.subr.mxu0 0.0
      %448 = vmatpush1.msra.mxu0 0.0
      %449 = vmatprep.subr.mxu0 0.0
      %450 = vmatpush1.msra.mxu0 0.0
      %451 = vmatprep.subr.mxu0 0.0
      %452 = vmatpush1.msra.mxu0 0.0
      %453 = vmatprep.subr.mxu0 0.0
      %454 = vmatpush1.msra.mxu0 0.0
      %455 = vmatprep.subr.mxu0 0.0
      %456 = vmatpush1.msra.mxu0 0.0
      %457 = vmatprep.subr.mxu0 0.0
      %458 = vmatpush1.msra.mxu0 0.0
      %459 = vmatprep.subr.mxu0 0.0
      %460 = vmatpush1.msra.mxu0 0.0
      %461 = vmatprep.subr.mxu0 0.0
      %462 = vmatpush1.msra.mxu0 0.0
      %463 = vmatprep.subr.mxu0 0.0
      %464 = vmatpush1.msra.mxu0 0.0
      %465 = vmatprep.subr.mxu0 0.0
      %466 = vmatpush1.msra.mxu0 %v157
      %467 = vmatprep.subr.mxu0 0.0
      %468 = vmatpush1.msra.mxu0 %v156
      %469 = vmatprep.subr.mxu0 0.0
      %470 = vmatpush1.msra.mxu0 %v155
      %471 = vmatprep.subr.mxu0 0.0
      %472 = vmatpush1.msra.mxu0 %v154
      %473 = vmatprep.subr.mxu0 0.0
      %474 = vmatpush2.msra.mxu0 0.0
      %475 = vmatprep.subr.mxu0 0.0
      %476 = vmatpush2.msra.mxu0 0.0
      %477 = vmatprep.subr.mxu0 0.0
      %478 = vmatpush2.msra.mxu0 0.0
      %479 = vmatprep.subr.mxu0 0.0
      %480 = vmatpush2.msra.mxu0 0.0
      %481 = vmatprep.subr.mxu0 0.0
      %482 = vmatpush2.msra.mxu0 0.0
      %483 = vmatprep.subr.mxu0 0.0
      %484 = vmatpush2.msra.mxu0 0.0
      %485 = vmatprep.subr.mxu0 0.0
      %486 = vmatpush2.msra.mxu0 0.0
      %487 = vmatprep.subr.mxu0 0.0
      %488 = vmatpush2.msra.mxu0 0.0
      %489 = vmatprep.subr.mxu0 0.0
      %490 = vmatpush2.msra.mxu0 0.0
      %491 = vmatprep.subr.mxu0 0.0
      %492 = vmatpush2.msra.mxu0 0.0
      %493 = vmatprep.subr.mxu0 0.0
      %494 = vmatpush2.msra.mxu0 0.0
      %495 = vmatprep.subr.mxu0 0.0
      %496 = vmatpush2.msra.mxu0 0.0
      %497 = vmatprep.subr.mxu0 0.0
      %498 = vmatpush2.msra.mxu0 0.0
      %499 = vmatprep.subr.mxu0 0.0
      %500 = vmatpush2.msra.mxu0 0.0
      %501 = vmatprep.subr.mxu0 0.0
      %502 = vmatpush2.msra.mxu0 0.0
      %503 = vmatprep.subr.mxu0 0.0
      %504 = vmatpush2.msra.mxu0 0.0
      %505 = vmatprep.mubr.f32.mxu0 0.0
      %506 = vmatmul.mubr.f32.gmra.mxu0 %v439
      %v507 = vpop.f32.mrf.mxu0
      %v508 = vadd.f32 0.0, %v507
      %v509 = vpop.f32.mrf.mxu0
      %510 = vdwg.mxu0
      %v511 = vadd.f32 %v437, %v508
      %v512 = vxor.u32 %v511, 2147483648
      %v513 = vmul.f32 %v512, 1.442695
      %v514 = vpow.pop %v513
      %v515 = vadd.f32 %v514, 1.0
      %v516 = vrcp.pop %v515
      %v517 = vmul.f32 1.0, %v516
      %v518 = vmax.f32 %v511, 0.0
      %v519 = vmul.f32 %v517, %v433
      %v520 = vsub.f32 1.0, %v517
      %522 = vrot.lane.b32.xlu0 %v518, 96
      %v523 = vpop.permute.xlu0 %522
      %v525 = vmul.f32 %v520, %v523
      %v526 = vadd.f32 %v519, %v525
      %s527 = scalar_lea.vmem %s145, 24
      %528 = vst.msk [vmem:[%s527] sm:$0xff] %vm159, %v526
      %s529 = scalar_lea.vmem %s139, 32
      %v530 = vld [vmem:[%s529] sm:$0xff]
      %v532 = vsel %vm159, %v526, 0
      %534 = vmatprep.subr.mxu0 0.0
      %535 = vmatpush1.msra.mxu0 0.0
      %536 = vmatprep.subr.mxu0 0.0
      %537 = vmatpush1.msra.mxu0 0.0
      %538 = vmatprep.subr.mxu0 0.0
      %539 = vmatpush1.msra.mxu0 0.0
      %540 = vmatprep.subr.mxu0 0.0
      %541 = vmatpush1.msra.mxu0 0.0
      %542 = vmatprep.subr.mxu0 0.0
      %543 = vmatpush1.msra.mxu0 0.0
      %544 = vmatprep.subr.mxu0 0.0
      %545 = vmatpush1.msra.mxu0 0.0
      %546 = vmatprep.subr.mxu0 0.0
      %547 = vmatpush1.msra.mxu0 0.0
      %548 = vmatprep.subr.mxu0 0.0
      %549 = vmatpush1.msra.mxu0 0.0
      %550 = vmatprep.subr.mxu0 0.0
      %551 = vmatpush1.msra.mxu0 0.0
      %552 = vmatprep.subr.mxu0 0.0
      %553 = vmatpush1.msra.mxu0 0.0
      %554 = vmatprep.subr.mxu0 0.0
      %555 = vmatpush1.msra.mxu0 0.0
      %556 = vmatprep.subr.mxu0 0.0
      %557 = vmatpush1.msra.mxu0 0.0
      %558 = vmatprep.subr.mxu0 0.0
      %559 = vmatpush1.msra.mxu0 %v157
      %560 = vmatprep.subr.mxu0 0.0
      %561 = vmatpush1.msra.mxu0 %v156
      %562 = vmatprep.subr.mxu0 0.0
      %563 = vmatpush1.msra.mxu0 %v155
      %564 = vmatprep.subr.mxu0 0.0
      %565 = vmatpush1.msra.mxu0 %v154
      %566 = vmatprep.subr.mxu0 0.0
      %567 = vmatpush2.msra.mxu0 0.0
      %568 = vmatprep.subr.mxu0 0.0
      %569 = vmatpush2.msra.mxu0 0.0
      %570 = vmatprep.subr.mxu0 0.0
      %571 = vmatpush2.msra.mxu0 0.0
      %572 = vmatprep.subr.mxu0 0.0
      %573 = vmatpush2.msra.mxu0 0.0
      %574 = vmatprep.subr.mxu0 0.0
      %575 = vmatpush2.msra.mxu0 0.0
      %576 = vmatprep.subr.mxu0 0.0
      %577 = vmatpush2.msra.mxu0 0.0
      %578 = vmatprep.subr.mxu0 0.0
      %579 = vmatpush2.msra.mxu0 0.0
      %580 = vmatprep.subr.mxu0 0.0
      %581 = vmatpush2.msra.mxu0 0.0
      %582 = vmatprep.subr.mxu0 0.0
      %583 = vmatpush2.msra.mxu0 0.0
      %584 = vmatprep.subr.mxu0 0.0
      %585 = vmatpush2.msra.mxu0 0.0
      %586 = vmatprep.subr.mxu0 0.0
      %587 = vmatpush2.msra.mxu0 0.0
      %588 = vmatprep.subr.mxu0 0.0
      %589 = vmatpush2.msra.mxu0 0.0
      %590 = vmatprep.subr.mxu0 0.0
      %591 = vmatpush2.msra.mxu0 0.0
      %592 = vmatprep.subr.mxu0 0.0
      %593 = vmatpush2.msra.mxu0 0.0
      %594 = vmatprep.subr.mxu0 0.0
      %595 = vmatpush2.msra.mxu0 0.0
      %596 = vmatprep.subr.mxu0 0.0
      %597 = vmatpush2.msra.mxu0 0.0
      %598 = vmatprep.mubr.f32.mxu0 0.0
      %599 = vmatmul.mubr.f32.gmra.mxu0 %v532
      %v600 = vpop.f32.mrf.mxu0
      %v601 = vadd.f32 0.0, %v600
      %v602 = vpop.f32.mrf.mxu0
      %603 = vdwg.mxu0
      %v604 = vadd.f32 %v530, %v601
      %v605 = vxor.u32 %v604, 2147483648
      %v606 = vmul.f32 %v605, 1.442695
      %v607 = vpow.pop %v606
      %v608 = vadd.f32 %v607, 1.0
      %v609 = vrcp.pop %v608
      %v610 = vmul.f32 1.0, %v609
      %v611 = vmax.f32 %v604, 0.0
      %v612 = vmul.f32 %v610, %v526
      %v613 = vsub.f32 1.0, %v610
      %615 = vrot.lane.b32.xlu0 %v611, 96
      %v616 = vpop.permute.xlu0 %615
      %v618 = vmul.f32 %v613, %v616
      %v619 = vadd.f32 %v612, %v618
      %s620 = scalar_lea.vmem %s145, 32
      %621 = vst.msk [vmem:[%s620] sm:$0xff] %vm159, %v619
      %s622 = scalar_lea.vmem %s139, 40
      %v623 = vld [vmem:[%s622] sm:$0xff]
      %v625 = vsel %vm159, %v619, 0
      %627 = vmatprep.subr.mxu0 0.0
      %628 = vmatpush1.msra.mxu0 0.0
      %629 = vmatprep.subr.mxu0 0.0
      %630 = vmatpush1.msra.mxu0 0.0
      %631 = vmatprep.subr.mxu0 0.0
      %632 = vmatpush1.msra.mxu0 0.0
      %633 = vmatprep.subr.mxu0 0.0
      %634 = vmatpush1.msra.mxu0 0.0
      %635 = vmatprep.subr.mxu0 0.0
      %636 = vmatpush1.msra.mxu0 0.0
      %637 = vmatprep.subr.mxu0 0.0
      %638 = vmatpush1.msra.mxu0 0.0
      %639 = vmatprep.subr.mxu0 0.0
      %640 = vmatpush1.msra.mxu0 0.0
      %641 = vmatprep.subr.mxu0 0.0
      %642 = vmatpush1.msra.mxu0 0.0
      %643 = vmatprep.subr.mxu0 0.0
      %644 = vmatpush1.msra.mxu0 0.0
      %645 = vmatprep.subr.mxu0 0.0
      %646 = vmatpush1.msra.mxu0 0.0
      %647 = vmatprep.subr.mxu0 0.0
      %648 = vmatpush1.msra.mxu0 0.0
      %649 = vmatprep.subr.mxu0 0.0
      %650 = vmatpush1.msra.mxu0 0.0
      %651 = vmatprep.subr.mxu0 0.0
      %652 = vmatpush1.msra.mxu0 %v157
      %653 = vmatprep.subr.mxu0 0.0
      %654 = vmatpush1.msra.mxu0 %v156
      %655 = vmatprep.subr.mxu0 0.0
      %656 = vmatpush1.msra.mxu0 %v155
      %657 = vmatprep.subr.mxu0 0.0
      %658 = vmatpush1.msra.mxu0 %v154
      %659 = vmatprep.subr.mxu0 0.0
      %660 = vmatpush2.msra.mxu0 0.0
      %661 = vmatprep.subr.mxu0 0.0
      %662 = vmatpush2.msra.mxu0 0.0
      %663 = vmatprep.subr.mxu0 0.0
      %664 = vmatpush2.msra.mxu0 0.0
      %665 = vmatprep.subr.mxu0 0.0
      %666 = vmatpush2.msra.mxu0 0.0
      %667 = vmatprep.subr.mxu0 0.0
      %668 = vmatpush2.msra.mxu0 0.0
      %669 = vmatprep.subr.mxu0 0.0
      %670 = vmatpush2.msra.mxu0 0.0
      %671 = vmatprep.subr.mxu0 0.0
      %672 = vmatpush2.msra.mxu0 0.0
      %673 = vmatprep.subr.mxu0 0.0
      %674 = vmatpush2.msra.mxu0 0.0
      %675 = vmatprep.subr.mxu0 0.0
      %676 = vmatpush2.msra.mxu0 0.0
      %677 = vmatprep.subr.mxu0 0.0
      %678 = vmatpush2.msra.mxu0 0.0
      %679 = vmatprep.subr.mxu0 0.0
      %680 = vmatpush2.msra.mxu0 0.0
      %681 = vmatprep.subr.mxu0 0.0
      %682 = vmatpush2.msra.mxu0 0.0
      %683 = vmatprep.subr.mxu0 0.0
      %684 = vmatpush2.msra.mxu0 0.0
      %685 = vmatprep.subr.mxu0 0.0
      %686 = vmatpush2.msra.mxu0 0.0
      %687 = vmatprep.subr.mxu0 0.0
      %688 = vmatpush2.msra.mxu0 0.0
      %689 = vmatprep.subr.mxu0 0.0
      %690 = vmatpush2.msra.mxu0 0.0
      %691 = vmatprep.mubr.f32.mxu0 0.0
      %692 = vmatmul.mubr.f32.gmra.mxu0 %v625
      %v693 = vpop.f32.mrf.mxu0
      %v694 = vadd.f32 0.0, %v693
      %v695 = vpop.f32.mrf.mxu0
      %696 = vdwg.mxu0
      %v697 = vadd.f32 %v623, %v694
      %v698 = vxor.u32 %v697, 2147483648
      %v699 = vmul.f32 %v698, 1.442695
      %v700 = vpow.pop %v699
      %v701 = vadd.f32 %v700, 1.0
      %v702 = vrcp.pop %v701
      %v703 = vmul.f32 1.0, %v702
      %v704 = vmax.f32 %v697, 0.0
      %v705 = vmul.f32 %v703, %v619
      %v706 = vsub.f32 1.0, %v703
      %708 = vrot.lane.b32.xlu0 %v704, 96
      %v709 = vpop.permute.xlu0 %708
      %v711 = vmul.f32 %v706, %v709
      %v712 = vadd.f32 %v705, %v711
      %s713 = scalar_lea.vmem %s145, 40
      %714 = vst.msk [vmem:[%s713] sm:$0xff] %vm159, %v712
      %s715 = scalar_lea.vmem %s139, 48
      %v716 = vld [vmem:[%s715] sm:$0xff]
      %v718 = vsel %vm159, %v712, 0
      %720 = vmatprep.subr.mxu0 0.0
      %721 = vmatpush1.msra.mxu0 0.0
      %722 = vmatprep.subr.mxu0 0.0
      %723 = vmatpush1.msra.mxu0 0.0
      %724 = vmatprep.subr.mxu0 0.0
      %725 = vmatpush1.msra.mxu0 0.0
      %726 = vmatprep.subr.mxu0 0.0
      %727 = vmatpush1.msra.mxu0 0.0
      %728 = vmatprep.subr.mxu0 0.0
      %729 = vmatpush1.msra.mxu0 0.0
      %730 = vmatprep.subr.mxu0 0.0
      %731 = vmatpush1.msra.mxu0 0.0
      %732 = vmatprep.subr.mxu0 0.0
      %733 = vmatpush1.msra.mxu0 0.0
      %734 = vmatprep.subr.mxu0 0.0
      %735 = vmatpush1.msra.mxu0 0.0
      %736 = vmatprep.subr.mxu0 0.0
      %737 = vmatpush1.msra.mxu0 0.0
      %738 = vmatprep.subr.mxu0 0.0
      %739 = vmatpush1.msra.mxu0 0.0
      %740 = vmatprep.subr.mxu0 0.0
      %741 = vmatpush1.msra.mxu0 0.0
      %742 = vmatprep.subr.mxu0 0.0
      %743 = vmatpush1.msra.mxu0 0.0
      %744 = vmatprep.subr.mxu0 0.0
      %745 = vmatpush1.msra.mxu0 %v157
      %746 = vmatprep.subr.mxu0 0.0
      %747 = vmatpush1.msra.mxu0 %v156
      %748 = vmatprep.subr.mxu0 0.0
      %749 = vmatpush1.msra.mxu0 %v155
      %750 = vmatprep.subr.mxu0 0.0
      %751 = vmatpush1.msra.mxu0 %v154
      %752 = vmatprep.subr.mxu0 0.0
      %753 = vmatpush2.msra.mxu0 0.0
      %754 = vmatprep.subr.mxu0 0.0
      %755 = vmatpush2.msra.mxu0 0.0
      %756 = vmatprep.subr.mxu0 0.0
      %757 = vmatpush2.msra.mxu0 0.0
      %758 = vmatprep.subr.mxu0 0.0
      %759 = vmatpush2.msra.mxu0 0.0
      %760 = vmatprep.subr.mxu0 0.0
      %761 = vmatpush2.msra.mxu0 0.0
      %762 = vmatprep.subr.mxu0 0.0
      %763 = vmatpush2.msra.mxu0 0.0
      %764 = vmatprep.subr.mxu0 0.0
      %765 = vmatpush2.msra.mxu0 0.0
      %766 = vmatprep.subr.mxu0 0.0
      %767 = vmatpush2.msra.mxu0 0.0
      %768 = vmatprep.subr.mxu0 0.0
      %769 = vmatpush2.msra.mxu0 0.0
      %770 = vmatprep.subr.mxu0 0.0
      %771 = vmatpush2.msra.mxu0 0.0
      %772 = vmatprep.subr.mxu0 0.0
      %773 = vmatpush2.msra.mxu0 0.0
      %774 = vmatprep.subr.mxu0 0.0
      %775 = vmatpush2.msra.mxu0 0.0
      %776 = vmatprep.subr.mxu0 0.0
      %777 = vmatpush2.msra.mxu0 0.0
      %778 = vmatprep.subr.mxu0 0.0
      %779 = vmatpush2.msra.mxu0 0.0
      %780 = vmatprep.subr.mxu0 0.0
      %781 = vmatpush2.msra.mxu0 0.0
      %782 = vmatprep.subr.mxu0 0.0
      %783 = vmatpush2.msra.mxu0 0.0
      %784 = vmatprep.mubr.f32.mxu0 0.0
      %785 = vmatmul.mubr.f32.gmra.mxu0 %v718
      %v786 = vpop.f32.mrf.mxu0
      %v787 = vadd.f32 0.0, %v786
      %v788 = vpop.f32.mrf.mxu0
      %789 = vdwg.mxu0
      %v790 = vadd.f32 %v716, %v787
      %v791 = vxor.u32 %v790, 2147483648
      %v792 = vmul.f32 %v791, 1.442695
      %v793 = vpow.pop %v792
      %v794 = vadd.f32 %v793, 1.0
      %v795 = vrcp.pop %v794
      %v796 = vmul.f32 1.0, %v795
      %v797 = vmax.f32 %v790, 0.0
      %v798 = vmul.f32 %v796, %v712
      %v799 = vsub.f32 1.0, %v796
      %801 = vrot.lane.b32.xlu0 %v797, 96
      %v802 = vpop.permute.xlu0 %801
      %v804 = vmul.f32 %v799, %v802
      %v805 = vadd.f32 %v798, %v804
      %s806 = scalar_lea.vmem %s145, 48
      %807 = vst.msk [vmem:[%s806] sm:$0xff] %vm159, %v805
      %s808 = scalar_lea.vmem %s139, 56
      %v809 = vld [vmem:[%s808] sm:$0xff]
      %v811 = vsel %vm159, %v805, 0
      %813 = vmatprep.subr.mxu0 0.0
      %814 = vmatpush1.msra.mxu0 0.0
      %815 = vmatprep.subr.mxu0 0.0
      %816 = vmatpush1.msra.mxu0 0.0
      %817 = vmatprep.subr.mxu0 0.0
      %818 = vmatpush1.msra.mxu0 0.0
      %819 = vmatprep.subr.mxu0 0.0
      %820 = vmatpush1.msra.mxu0 0.0
      %821 = vmatprep.subr.mxu0 0.0
      %822 = vmatpush1.msra.mxu0 0.0
      %823 = vmatprep.subr.mxu0 0.0
      %824 = vmatpush1.msra.mxu0 0.0
      %825 = vmatprep.subr.mxu0 0.0
      %826 = vmatpush1.msra.mxu0 0.0
      %827 = vmatprep.subr.mxu0 0.0
      %828 = vmatpush1.msra.mxu0 0.0
      %829 = vmatprep.subr.mxu0 0.0
      %830 = vmatpush1.msra.mxu0 0.0
      %831 = vmatprep.subr.mxu0 0.0
      %832 = vmatpush1.msra.mxu0 0.0
      %833 = vmatprep.subr.mxu0 0.0
      %834 = vmatpush1.msra.mxu0 0.0
      %835 = vmatprep.subr.mxu0 0.0
      %836 = vmatpush1.msra.mxu0 0.0
      %837 = vmatprep.subr.mxu0 0.0
      %838 = vmatpush1.msra.mxu0 %v157
      %839 = vmatprep.subr.mxu0 0.0
      %840 = vmatpush1.msra.mxu0 %v156
      %841 = vmatprep.subr.mxu0 0.0
      %842 = vmatpush1.msra.mxu0 %v155
      %843 = vmatprep.subr.mxu0 0.0
      %844 = vmatpush1.msra.mxu0 %v154
      %845 = vmatprep.subr.mxu0 0.0
      %846 = vmatpush2.msra.mxu0 0.0
      %847 = vmatprep.subr.mxu0 0.0
      %848 = vmatpush2.msra.mxu0 0.0
      %849 = vmatprep.subr.mxu0 0.0
      %850 = vmatpush2.msra.mxu0 0.0
      %851 = vmatprep.subr.mxu0 0.0
      %852 = vmatpush2.msra.mxu0 0.0
      %853 = vmatprep.subr.mxu0 0.0
      %854 = vmatpush2.msra.mxu0 0.0
      %855 = vmatprep.subr.mxu0 0.0
      %856 = vmatpush2.msra.mxu0 0.0
      %857 = vmatprep.subr.mxu0 0.0
      %858 = vmatpush2.msra.mxu0 0.0
      %859 = vmatprep.subr.mxu0 0.0
      %860 = vmatpush2.msra.mxu0 0.0
      %861 = vmatprep.subr.mxu0 0.0
      %862 = vmatpush2.msra.mxu0 0.0
      %863 = vmatprep.subr.mxu0 0.0
      %864 = vmatpush2.msra.mxu0 0.0
      %865 = vmatprep.subr.mxu0 0.0
      %866 = vmatpush2.msra.mxu0 0.0
      %867 = vmatprep.subr.mxu0 0.0
      %868 = vmatpush2.msra.mxu0 0.0
      %869 = vmatprep.subr.mxu0 0.0
      %870 = vmatpush2.msra.mxu0 0.0
      %871 = vmatprep.subr.mxu0 0.0
      %872 = vmatpush2.msra.mxu0 0.0
      %873 = vmatprep.subr.mxu0 0.0
      %874 = vmatpush2.msra.mxu0 0.0
      %875 = vmatprep.subr.mxu0 0.0
      %876 = vmatpush2.msra.mxu0 0.0
      %877 = vmatprep.mubr.f32.mxu0 0.0
      %878 = vmatmul.mubr.f32.gmra.mxu0 %v811
      %v879 = vpop.f32.mrf.mxu0
      %v880 = vadd.f32 0.0, %v879
      %v881 = vpop.f32.mrf.mxu0
      %882 = vdwg.mxu0
      %v883 = vadd.f32 %v809, %v880
      %v884 = vxor.u32 %v883, 2147483648
      %v885 = vmul.f32 %v884, 1.442695
      %v886 = vpow.pop %v885
      %v887 = vadd.f32 %v886, 1.0
      %v888 = vrcp.pop %v887
      %v889 = vmul.f32 1.0, %v888
      %v890 = vmax.f32 %v883, 0.0
      %v891 = vmul.f32 %v889, %v805
      %v892 = vsub.f32 1.0, %v889
      %894 = vrot.lane.b32.xlu0 %v890, 96
      %v895 = vpop.permute.xlu0 %894
      %v897 = vmul.f32 %v892, %v895
      %v898 = vadd.f32 %v891, %v897
      %s899 = scalar_lea.vmem %s145, 56
      %900 = vst.msk [vmem:[%s899] sm:$0xff] %vm159, %v898
      %s901 = scalar_lea.vmem %s139, 64
      %v902 = vld [vmem:[%s901] sm:$0xff]
      %v904 = vsel %vm159, %v898, 0
      %906 = vmatprep.subr.mxu0 0.0
      %907 = vmatpush1.msra.mxu0 0.0
      %908 = vmatprep.subr.mxu0 0.0
      %909 = vmatpush1.msra.mxu0 0.0
      %910 = vmatprep.subr.mxu0 0.0
      %911 = vmatpush1.msra.mxu0 0.0
      %912 = vmatprep.subr.mxu0 0.0
      %913 = vmatpush1.msra.mxu0 0.0
      %914 = vmatprep.subr.mxu0 0.0
      %915 = vmatpush1.msra.mxu0 0.0
      %916 = vmatprep.subr.mxu0 0.0
      %917 = vmatpush1.msra.mxu0 0.0
      %918 = vmatprep.subr.mxu0 0.0
      %919 = vmatpush1.msra.mxu0 0.0
      %920 = vmatprep.subr.mxu0 0.0
      %921 = vmatpush1.msra.mxu0 0.0
      %922 = vmatprep.subr.mxu0 0.0
      %923 = vmatpush1.msra.mxu0 0.0
      %924 = vmatprep.subr.mxu0 0.0
      %925 = vmatpush1.msra.mxu0 0.0
      %926 = vmatprep.subr.mxu0 0.0
      %927 = vmatpush1.msra.mxu0 0.0
      %928 = vmatprep.subr.mxu0 0.0
      %929 = vmatpush1.msra.mxu0 0.0
      %930 = vmatprep.subr.mxu0 0.0
      %931 = vmatpush1.msra.mxu0 %v157
      %932 = vmatprep.subr.mxu0 0.0
      %933 = vmatpush1.msra.mxu0 %v156
      %934 = vmatprep.subr.mxu0 0.0
      %935 = vmatpush1.msra.mxu0 %v155
      %936 = vmatprep.subr.mxu0 0.0
      %937 = vmatpush1.msra.mxu0 %v154
      %938 = vmatprep.subr.mxu0 0.0
      %939 = vmatpush2.msra.mxu0 0.0
      %940 = vmatprep.subr.mxu0 0.0
      %941 = vmatpush2.msra.mxu0 0.0
      %942 = vmatprep.subr.mxu0 0.0
      %943 = vmatpush2.msra.mxu0 0.0
      %944 = vmatprep.subr.mxu0 0.0
      %945 = vmatpush2.msra.mxu0 0.0
      %946 = vmatprep.subr.mxu0 0.0
      %947 = vmatpush2.msra.mxu0 0.0
      %948 = vmatprep.subr.mxu0 0.0
      %949 = vmatpush2.msra.mxu0 0.0
      %950 = vmatprep.subr.mxu0 0.0
      %951 = vmatpush2.msra.mxu0 0.0
      %952 = vmatprep.subr.mxu0 0.0
      %953 = vmatpush2.msra.mxu0 0.0
      %954 = vmatprep.subr.mxu0 0.0
      %955 = vmatpush2.msra.mxu0 0.0
      %956 = vmatprep.subr.mxu0 0.0
      %957 = vmatpush2.msra.mxu0 0.0
      %958 = vmatprep.subr.mxu0 0.0
      %959 = vmatpush2.msra.mxu0 0.0
      %960 = vmatprep.subr.mxu0 0.0
      %961 = vmatpush2.msra.mxu0 0.0
      %962 = vmatprep.subr.mxu0 0.0
      %963 = vmatpush2.msra.mxu0 0.0
      %964 = vmatprep.subr.mxu0 0.0
      %965 = vmatpush2.msra.mxu0 0.0
      %966 = vmatprep.subr.mxu0 0.0
      %967 = vmatpush2.msra.mxu0 0.0
      %968 = vmatprep.subr.mxu0 0.0
      %969 = vmatpush2.msra.mxu0 0.0
      %970 = vmatprep.mubr.f32.mxu0 0.0
      %971 = vmatmul.mubr.f32.gmra.mxu0 %v904
      %v972 = vpop.f32.mrf.mxu0
      %v973 = vadd.f32 0.0, %v972
      %v974 = vpop.f32.mrf.mxu0
      %975 = vdwg.mxu0
      %v976 = vadd.f32 %v902, %v973
      %v977 = vxor.u32 %v976, 2147483648
      %v978 = vmul.f32 %v977, 1.442695
      %v979 = vpow.pop %v978
      %v980 = vadd.f32 %v979, 1.0
      %v981 = vrcp.pop %v980
      %v982 = vmul.f32 1.0, %v981
      %v983 = vmax.f32 %v976, 0.0
      %v984 = vmul.f32 %v982, %v898
      %v985 = vsub.f32 1.0, %v982
      %987 = vrot.lane.b32.xlu0 %v983, 96
      %v988 = vpop.permute.xlu0 %987
      %v990 = vmul.f32 %v985, %v988
      %v991 = vadd.f32 %v984, %v990
      %s992 = scalar_lea.vmem %s145, 64
      %993 = vst.msk [vmem:[%s992] sm:$0xff] %vm159, %v991
      %s994 = scalar_lea.vmem %s139, 72
      %v995 = vld [vmem:[%s994] sm:$0xff]
      %v997 = vsel %vm159, %v991, 0
      %999 = vmatprep.subr.mxu0 0.0
      %1000 = vmatpush1.msra.mxu0 0.0
      %1001 = vmatprep.subr.mxu0 0.0
      %1002 = vmatpush1.msra.mxu0 0.0
      %1003 = vmatprep.subr.mxu0 0.0
      %1004 = vmatpush1.msra.mxu0 0.0
      %1005 = vmatprep.subr.mxu0 0.0
      %1006 = vmatpush1.msra.mxu0 0.0
      %1007 = vmatprep.subr.mxu0 0.0
      %1008 = vmatpush1.msra.mxu0 0.0
      %1009 = vmatprep.subr.mxu0 0.0
      %1010 = vmatpush1.msra.mxu0 0.0
      %1011 = vmatprep.subr.mxu0 0.0
      %1012 = vmatpush1.msra.mxu0 0.0
      %1013 = vmatprep.subr.mxu0 0.0
      %1014 = vmatpush1.msra.mxu0 0.0
      %1015 = vmatprep.subr.mxu0 0.0
      %1016 = vmatpush1.msra.mxu0 0.0
      %1017 = vmatprep.subr.mxu0 0.0
      %1018 = vmatpush1.msra.mxu0 0.0
      %1019 = vmatprep.subr.mxu0 0.0
      %1020 = vmatpush1.msra.mxu0 0.0
      %1021 = vmatprep.subr.mxu0 0.0
      %1022 = vmatpush1.msra.mxu0 0.0
      %1023 = vmatprep.subr.mxu0 0.0
      %1024 = vmatpush1.msra.mxu0 %v157
      %1025 = vmatprep.subr.mxu0 0.0
      %1026 = vmatpush1.msra.mxu0 %v156
      %1027 = vmatprep.subr.mxu0 0.0
      %1028 = vmatpush1.msra.mxu0 %v155
      %1029 = vmatprep.subr.mxu0 0.0
      %1030 = vmatpush1.msra.mxu0 %v154
      %1031 = vmatprep.subr.mxu0 0.0
      %1032 = vmatpush2.msra.mxu0 0.0
      %1033 = vmatprep.subr.mxu0 0.0
      %1034 = vmatpush2.msra.mxu0 0.0
      %1035 = vmatprep.subr.mxu0 0.0
      %1036 = vmatpush2.msra.mxu0 0.0
      %1037 = vmatprep.subr.mxu0 0.0
      %1038 = vmatpush2.msra.mxu0 0.0
      %1039 = vmatprep.subr.mxu0 0.0
      %1040 = vmatpush2.msra.mxu0 0.0
      %1041 = vmatprep.subr.mxu0 0.0
      %1042 = vmatpush2.msra.mxu0 0.0
      %1043 = vmatprep.subr.mxu0 0.0
      %1044 = vmatpush2.msra.mxu0 0.0
      %1045 = vmatprep.subr.mxu0 0.0
      %1046 = vmatpush2.msra.mxu0 0.0
      %1047 = vmatprep.subr.mxu0 0.0
      %1048 = vmatpush2.msra.mxu0 0.0
      %1049 = vmatprep.subr.mxu0 0.0
      %1050 = vmatpush2.msra.mxu0 0.0
      %1051 = vmatprep.subr.mxu0 0.0
      %1052 = vmatpush2.msra.mxu0 0.0
      %1053 = vmatprep.subr.mxu0 0.0
      %1054 = vmatpush2.msra.mxu0 0.0
      %1055 = vmatprep.subr.mxu0 0.0
      %1056 = vmatpush2.msra.mxu0 0.0
      %1057 = vmatprep.subr.mxu0 0.0
      %1058 = vmatpush2.msra.mxu0 0.0
      %1059 = vmatprep.subr.mxu0 0.0
      %1060 = vmatpush2.msra.mxu0 0.0
      %1061 = vmatprep.subr.mxu0 0.0
      %1062 = vmatpush2.msra.mxu0 0.0
      %1063 = vmatprep.mubr.f32.mxu0 0.0
      %1064 = vmatmul.mubr.f32.gmra.mxu0 %v997
      %v1065 = vpop.f32.mrf.mxu0
      %v1066 = vadd.f32 0.0, %v1065
      %v1067 = vpop.f32.mrf.mxu0
      %1068 = vdwg.mxu0
      %v1069 = vadd.f32 %v995, %v1066
      %v1070 = vxor.u32 %v1069, 2147483648
      %v1071 = vmul.f32 %v1070, 1.442695
      %v1072 = vpow.pop %v1071
      %v1073 = vadd.f32 %v1072, 1.0
      %v1074 = vrcp.pop %v1073
      %v1075 = vmul.f32 1.0, %v1074
      %v1076 = vmax.f32 %v1069, 0.0
      %v1077 = vmul.f32 %v1075, %v991
      %v1078 = vsub.f32 1.0, %v1075
      %1080 = vrot.lane.b32.xlu0 %v1076, 96
      %v1081 = vpop.permute.xlu0 %1080
      %v1083 = vmul.f32 %v1078, %v1081
      %v1084 = vadd.f32 %v1077, %v1083
      %s1085 = scalar_lea.vmem %s145, 72
      %1086 = vst.msk [vmem:[%s1085] sm:$0xff] %vm159, %v1084
      %s1087 = scalar_lea.vmem %s139, 80
      %v1088 = vld [vmem:[%s1087] sm:$0xff]
      %v1090 = vsel %vm159, %v1084, 0
      %1092 = vmatprep.subr.mxu0 0.0
      %1093 = vmatpush1.msra.mxu0 0.0
      %1094 = vmatprep.subr.mxu0 0.0
      %1095 = vmatpush1.msra.mxu0 0.0
      %1096 = vmatprep.subr.mxu0 0.0
      %1097 = vmatpush1.msra.mxu0 0.0
      %1098 = vmatprep.subr.mxu0 0.0
      %1099 = vmatpush1.msra.mxu0 0.0
      %1100 = vmatprep.subr.mxu0 0.0
      %1101 = vmatpush1.msra.mxu0 0.0
      %1102 = vmatprep.subr.mxu0 0.0
      %1103 = vmatpush1.msra.mxu0 0.0
      %1104 = vmatprep.subr.mxu0 0.0
      %1105 = vmatpush1.msra.mxu0 0.0
      %1106 = vmatprep.subr.mxu0 0.0
      %1107 = vmatpush1.msra.mxu0 0.0
      %1108 = vmatprep.subr.mxu0 0.0
      %1109 = vmatpush1.msra.mxu0 0.0
      %1110 = vmatprep.subr.mxu0 0.0
      %1111 = vmatpush1.msra.mxu0 0.0
      %1112 = vmatprep.subr.mxu0 0.0
      %1113 = vmatpush1.msra.mxu0 0.0
      %1114 = vmatprep.subr.mxu0 0.0
      %1115 = vmatpush1.msra.mxu0 0.0
      %1116 = vmatprep.subr.mxu0 0.0
      %1117 = vmatpush1.msra.mxu0 %v157
      %1118 = vmatprep.subr.mxu0 0.0
      %1119 = vmatpush1.msra.mxu0 %v156
      %1120 = vmatprep.subr.mxu0 0.0
      %1121 = vmatpush1.msra.mxu0 %v155
      %1122 = vmatprep.subr.mxu0 0.0
      %1123 = vmatpush1.msra.mxu0 %v154
      %1124 = vmatprep.subr.mxu0 0.0
      %1125 = vmatpush2.msra.mxu0 0.0
      %1126 = vmatprep.subr.mxu0 0.0
      %1127 = vmatpush2.msra.mxu0 0.0
      %1128 = vmatprep.subr.mxu0 0.0
      %1129 = vmatpush2.msra.mxu0 0.0
      %1130 = vmatprep.subr.mxu0 0.0
      %1131 = vmatpush2.msra.mxu0 0.0
      %1132 = vmatprep.subr.mxu0 0.0
      %1133 = vmatpush2.msra.mxu0 0.0
      %1134 = vmatprep.subr.mxu0 0.0
      %1135 = vmatpush2.msra.mxu0 0.0
      %1136 = vmatprep.subr.mxu0 0.0
      %1137 = vmatpush2.msra.mxu0 0.0
      %1138 = vmatprep.subr.mxu0 0.0
      %1139 = vmatpush2.msra.mxu0 0.0
      %1140 = vmatprep.subr.mxu0 0.0
      %1141 = vmatpush2.msra.mxu0 0.0
      %1142 = vmatprep.subr.mxu0 0.0
      %1143 = vmatpush2.msra.mxu0 0.0
      %1144 = vmatprep.subr.mxu0 0.0
      %1145 = vmatpush2.msra.mxu0 0.0
      %1146 = vmatprep.subr.mxu0 0.0
      %1147 = vmatpush2.msra.mxu0 0.0
      %1148 = vmatprep.subr.mxu0 0.0
      %1149 = vmatpush2.msra.mxu0 0.0
      %1150 = vmatprep.subr.mxu0 0.0
      %1151 = vmatpush2.msra.mxu0 0.0
      %1152 = vmatprep.subr.mxu0 0.0
      %1153 = vmatpush2.msra.mxu0 0.0
      %1154 = vmatprep.subr.mxu0 0.0
      %1155 = vmatpush2.msra.mxu0 0.0
      %1156 = vmatprep.mubr.f32.mxu0 0.0
      %1157 = vmatmul.mubr.f32.gmra.mxu0 %v1090
      %v1158 = vpop.f32.mrf.mxu0
      %v1159 = vadd.f32 0.0, %v1158
      %v1160 = vpop.f32.mrf.mxu0
      %1161 = vdwg.mxu0
      %v1162 = vadd.f32 %v1088, %v1159
      %v1163 = vxor.u32 %v1162, 2147483648
      %v1164 = vmul.f32 %v1163, 1.442695
      %v1165 = vpow.pop %v1164
      %v1166 = vadd.f32 %v1165, 1.0
      %v1167 = vrcp.pop %v1166
      %v1168 = vmul.f32 1.0, %v1167
      %v1169 = vmax.f32 %v1162, 0.0
      %v1170 = vmul.f32 %v1168, %v1084
      %v1171 = vsub.f32 1.0, %v1168
      %1173 = vrot.lane.b32.xlu0 %v1169, 96
      %v1174 = vpop.permute.xlu0 %1173
      %v1176 = vmul.f32 %v1171, %v1174
      %v1177 = vadd.f32 %v1170, %v1176
      %s1178 = scalar_lea.vmem %s145, 80
      %1179 = vst.msk [vmem:[%s1178] sm:$0xff] %vm159, %v1177
      %s1180 = scalar_lea.vmem %s139, 88
      %v1181 = vld [vmem:[%s1180] sm:$0xff]
      %v1183 = vsel %vm159, %v1177, 0
      %1185 = vmatprep.subr.mxu0 0.0
      %1186 = vmatpush1.msra.mxu0 0.0
      %1187 = vmatprep.subr.mxu0 0.0
      %1188 = vmatpush1.msra.mxu0 0.0
      %1189 = vmatprep.subr.mxu0 0.0
      %1190 = vmatpush1.msra.mxu0 0.0
      %1191 = vmatprep.subr.mxu0 0.0
      %1192 = vmatpush1.msra.mxu0 0.0
      %1193 = vmatprep.subr.mxu0 0.0
      %1194 = vmatpush1.msra.mxu0 0.0
      %1195 = vmatprep.subr.mxu0 0.0
      %1196 = vmatpush1.msra.mxu0 0.0
      %1197 = vmatprep.subr.mxu0 0.0
      %1198 = vmatpush1.msra.mxu0 0.0
      %1199 = vmatprep.subr.mxu0 0.0
      %1200 = vmatpush1.msra.mxu0 0.0
      %1201 = vmatprep.subr.mxu0 0.0
      %1202 = vmatpush1.msra.mxu0 0.0
      %1203 = vmatprep.subr.mxu0 0.0
      %1204 = vmatpush1.msra.mxu0 0.0
      %1205 = vmatprep.subr.mxu0 0.0
      %1206 = vmatpush1.msra.mxu0 0.0
      %1207 = vmatprep.subr.mxu0 0.0
      %1208 = vmatpush1.msra.mxu0 0.0
      %1209 = vmatprep.subr.mxu0 0.0
      %1210 = vmatpush1.msra.mxu0 %v157
      %1211 = vmatprep.subr.mxu0 0.0
      %1212 = vmatpush1.msra.mxu0 %v156
      %1213 = vmatprep.subr.mxu0 0.0
      %1214 = vmatpush1.msra.mxu0 %v155
      %1215 = vmatprep.subr.mxu0 0.0
      %1216 = vmatpush1.msra.mxu0 %v154
      %1217 = vmatprep.subr.mxu0 0.0
      %1218 = vmatpush2.msra.mxu0 0.0
      %1219 = vmatprep.subr.mxu0 0.0
      %1220 = vmatpush2.msra.mxu0 0.0
      %1221 = vmatprep.subr.mxu0 0.0
      %1222 = vmatpush2.msra.mxu0 0.0
      %1223 = vmatprep.subr.mxu0 0.0
      %1224 = vmatpush2.msra.mxu0 0.0
      %1225 = vmatprep.subr.mxu0 0.0
      %1226 = vmatpush2.msra.mxu0 0.0
      %1227 = vmatprep.subr.mxu0 0.0
      %1228 = vmatpush2.msra.mxu0 0.0
      %1229 = vmatprep.subr.mxu0 0.0
      %1230 = vmatpush2.msra.mxu0 0.0
      %1231 = vmatprep.subr.mxu0 0.0
      %1232 = vmatpush2.msra.mxu0 0.0
      %1233 = vmatprep.subr.mxu0 0.0
      %1234 = vmatpush2.msra.mxu0 0.0
      %1235 = vmatprep.subr.mxu0 0.0
      %1236 = vmatpush2.msra.mxu0 0.0
      %1237 = vmatprep.subr.mxu0 0.0
      %1238 = vmatpush2.msra.mxu0 0.0
      %1239 = vmatprep.subr.mxu0 0.0
      %1240 = vmatpush2.msra.mxu0 0.0
      %1241 = vmatprep.subr.mxu0 0.0
      %1242 = vmatpush2.msra.mxu0 0.0
      %1243 = vmatprep.subr.mxu0 0.0
      %1244 = vmatpush2.msra.mxu0 0.0
      %1245 = vmatprep.subr.mxu0 0.0
      %1246 = vmatpush2.msra.mxu0 0.0
      %1247 = vmatprep.subr.mxu0 0.0
      %1248 = vmatpush2.msra.mxu0 0.0
      %1249 = vmatprep.mubr.f32.mxu0 0.0
      %1250 = vmatmul.mubr.f32.gmra.mxu0 %v1183
      %v1251 = vpop.f32.mrf.mxu0
      %v1252 = vadd.f32 0.0, %v1251
      %v1253 = vpop.f32.mrf.mxu0
      %1254 = vdwg.mxu0
      %v1255 = vadd.f32 %v1181, %v1252
      %v1256 = vxor.u32 %v1255, 2147483648
      %v1257 = vmul.f32 %v1256, 1.442695
      %v1258 = vpow.pop %v1257
      %v1259 = vadd.f32 %v1258, 1.0
      %v1260 = vrcp.pop %v1259
      %v1261 = vmul.f32 1.0, %v1260
      %v1262 = vmax.f32 %v1255, 0.0
      %v1263 = vmul.f32 %v1261, %v1177
      %v1264 = vsub.f32 1.0, %v1261
      %1266 = vrot.lane.b32.xlu0 %v1262, 96
      %v1267 = vpop.permute.xlu0 %1266
      %v1269 = vmul.f32 %v1264, %v1267
      %v1270 = vadd.f32 %v1263, %v1269
      %s1271 = scalar_lea.vmem %s145, 88
      %1272 = vst.msk [vmem:[%s1271] sm:$0xff] %vm159, %v1270
      %s1273 = scalar_lea.vmem %s139, 96
      %v1274 = vld [vmem:[%s1273] sm:$0xff]
      %v1276 = vsel %vm159, %v1270, 0
      %1278 = vmatprep.subr.mxu0 0.0
      %1279 = vmatpush1.msra.mxu0 0.0
      %1280 = vmatprep.subr.mxu0 0.0
      %1281 = vmatpush1.msra.mxu0 0.0
      %1282 = vmatprep.subr.mxu0 0.0
      %1283 = vmatpush1.msra.mxu0 0.0
      %1284 = vmatprep.subr.mxu0 0.0
      %1285 = vmatpush1.msra.mxu0 0.0
      %1286 = vmatprep.subr.mxu0 0.0
      %1287 = vmatpush1.msra.mxu0 0.0
      %1288 = vmatprep.subr.mxu0 0.0
      %1289 = vmatpush1.msra.mxu0 0.0
      %1290 = vmatprep.subr.mxu0 0.0
      %1291 = vmatpush1.msra.mxu0 0.0
      %1292 = vmatprep.subr.mxu0 0.0
      %1293 = vmatpush1.msra.mxu0 0.0
      %1294 = vmatprep.subr.mxu0 0.0
      %1295 = vmatpush1.msra.mxu0 0.0
      %1296 = vmatprep.subr.mxu0 0.0
      %1297 = vmatpush1.msra.mxu0 0.0
      %1298 = vmatprep.subr.mxu0 0.0
      %1299 = vmatpush1.msra.mxu0 0.0
      %1300 = vmatprep.subr.mxu0 0.0
      %1301 = vmatpush1.msra.mxu0 0.0
      %1302 = vmatprep.subr.mxu0 0.0
      %1303 = vmatpush1.msra.mxu0 %v157
      %1304 = vmatprep.subr.mxu0 0.0
      %1305 = vmatpush1.msra.mxu0 %v156
      %1306 = vmatprep.subr.mxu0 0.0
      %1307 = vmatpush1.msra.mxu0 %v155
      %1308 = vmatprep.subr.mxu0 0.0
      %1309 = vmatpush1.msra.mxu0 %v154
      %1310 = vmatprep.subr.mxu0 0.0
      %1311 = vmatpush2.msra.mxu0 0.0
      %1312 = vmatprep.subr.mxu0 0.0
      %1313 = vmatpush2.msra.mxu0 0.0
      %1314 = vmatprep.subr.mxu0 0.0
      %1315 = vmatpush2.msra.mxu0 0.0
      %1316 = vmatprep.subr.mxu0 0.0
      %1317 = vmatpush2.msra.mxu0 0.0
      %1318 = vmatprep.subr.mxu0 0.0
      %1319 = vmatpush2.msra.mxu0 0.0
      %1320 = vmatprep.subr.mxu0 0.0
      %1321 = vmatpush2.msra.mxu0 0.0
      %1322 = vmatprep.subr.mxu0 0.0
      %1323 = vmatpush2.msra.mxu0 0.0
      %1324 = vmatprep.subr.mxu0 0.0
      %1325 = vmatpush2.msra.mxu0 0.0
      %1326 = vmatprep.subr.mxu0 0.0
      %1327 = vmatpush2.msra.mxu0 0.0
      %1328 = vmatprep.subr.mxu0 0.0
      %1329 = vmatpush2.msra.mxu0 0.0
      %1330 = vmatprep.subr.mxu0 0.0
      %1331 = vmatpush2.msra.mxu0 0.0
      %1332 = vmatprep.subr.mxu0 0.0
      %1333 = vmatpush2.msra.mxu0 0.0
      %1334 = vmatprep.subr.mxu0 0.0
      %1335 = vmatpush2.msra.mxu0 0.0
      %1336 = vmatprep.subr.mxu0 0.0
      %1337 = vmatpush2.msra.mxu0 0.0
      %1338 = vmatprep.subr.mxu0 0.0
      %1339 = vmatpush2.msra.mxu0 0.0
      %1340 = vmatprep.subr.mxu0 0.0
      %1341 = vmatpush2.msra.mxu0 0.0
      %1342 = vmatprep.mubr.f32.mxu0 0.0
      %1343 = vmatmul.mubr.f32.gmra.mxu0 %v1276
      %v1344 = vpop.f32.mrf.mxu0
      %v1345 = vadd.f32 0.0, %v1344
      %v1346 = vpop.f32.mrf.mxu0
      %1347 = vdwg.mxu0
      %v1348 = vadd.f32 %v1274, %v1345
      %v1349 = vxor.u32 %v1348, 2147483648
      %v1350 = vmul.f32 %v1349, 1.442695
      %v1351 = vpow.pop %v1350
      %v1352 = vadd.f32 %v1351, 1.0
      %v1353 = vrcp.pop %v1352
      %v1354 = vmul.f32 1.0, %v1353
      %v1355 = vmax.f32 %v1348, 0.0
      %v1356 = vmul.f32 %v1354, %v1270
      %v1357 = vsub.f32 1.0, %v1354
      %1359 = vrot.lane.b32.xlu0 %v1355, 96
      %v1360 = vpop.permute.xlu0 %1359
      %v1362 = vmul.f32 %v1357, %v1360
      %v1363 = vadd.f32 %v1356, %v1362
      %s1364 = scalar_lea.vmem %s145, 96
      %1365 = vst.msk [vmem:[%s1364] sm:$0xff] %vm159, %v1363
      %s1366 = scalar_lea.vmem %s139, 104
      %v1367 = vld [vmem:[%s1366] sm:$0xff]
      %v1369 = vsel %vm159, %v1363, 0
      %1371 = vmatprep.subr.mxu0 0.0
      %1372 = vmatpush1.msra.mxu0 0.0
      %1373 = vmatprep.subr.mxu0 0.0
      %1374 = vmatpush1.msra.mxu0 0.0
      %1375 = vmatprep.subr.mxu0 0.0
      %1376 = vmatpush1.msra.mxu0 0.0
      %1377 = vmatprep.subr.mxu0 0.0
      %1378 = vmatpush1.msra.mxu0 0.0
      %1379 = vmatprep.subr.mxu0 0.0
      %1380 = vmatpush1.msra.mxu0 0.0
      %1381 = vmatprep.subr.mxu0 0.0
      %1382 = vmatpush1.msra.mxu0 0.0
      %1383 = vmatprep.subr.mxu0 0.0
      %1384 = vmatpush1.msra.mxu0 0.0
      %1385 = vmatprep.subr.mxu0 0.0
      %1386 = vmatpush1.msra.mxu0 0.0
      %1387 = vmatprep.subr.mxu0 0.0
      %1388 = vmatpush1.msra.mxu0 0.0
      %1389 = vmatprep.subr.mxu0 0.0
      %1390 = vmatpush1.msra.mxu0 0.0
      %1391 = vmatprep.subr.mxu0 0.0
      %1392 = vmatpush1.msra.mxu0 0.0
      %1393 = vmatprep.subr.mxu0 0.0
      %1394 = vmatpush1.msra.mxu0 0.0
      %1395 = vmatprep.subr.mxu0 0.0
      %1396 = vmatpush1.msra.mxu0 %v157
      %1397 = vmatprep.subr.mxu0 0.0
      %1398 = vmatpush1.msra.mxu0 %v156
      %1399 = vmatprep.subr.mxu0 0.0
      %1400 = vmatpush1.msra.mxu0 %v155
      %1401 = vmatprep.subr.mxu0 0.0
      %1402 = vmatpush1.msra.mxu0 %v154
      %1403 = vmatprep.subr.mxu0 0.0
      %1404 = vmatpush2.msra.mxu0 0.0
      %1405 = vmatprep.subr.mxu0 0.0
      %1406 = vmatpush2.msra.mxu0 0.0
      %1407 = vmatprep.subr.mxu0 0.0
      %1408 = vmatpush2.msra.mxu0 0.0
      %1409 = vmatprep.subr.mxu0 0.0
      %1410 = vmatpush2.msra.mxu0 0.0
      %1411 = vmatprep.subr.mxu0 0.0
      %1412 = vmatpush2.msra.mxu0 0.0
      %1413 = vmatprep.subr.mxu0 0.0
      %1414 = vmatpush2.msra.mxu0 0.0
      %1415 = vmatprep.subr.mxu0 0.0
      %1416 = vmatpush2.msra.mxu0 0.0
      %1417 = vmatprep.subr.mxu0 0.0
      %1418 = vmatpush2.msra.mxu0 0.0
      %1419 = vmatprep.subr.mxu0 0.0
      %1420 = vmatpush2.msra.mxu0 0.0
      %1421 = vmatprep.subr.mxu0 0.0
      %1422 = vmatpush2.msra.mxu0 0.0
      %1423 = vmatprep.subr.mxu0 0.0
      %1424 = vmatpush2.msra.mxu0 0.0
      %1425 = vmatprep.subr.mxu0 0.0
      %1426 = vmatpush2.msra.mxu0 0.0
      %1427 = vmatprep.subr.mxu0 0.0
      %1428 = vmatpush2.msra.mxu0 0.0
      %1429 = vmatprep.subr.mxu0 0.0
      %1430 = vmatpush2.msra.mxu0 0.0
      %1431 = vmatprep.subr.mxu0 0.0
      %1432 = vmatpush2.msra.mxu0 0.0
      %1433 = vmatprep.subr.mxu0 0.0
      %1434 = vmatpush2.msra.mxu0 0.0
      %1435 = vmatprep.mubr.f32.mxu0 0.0
      %1436 = vmatmul.mubr.f32.gmra.mxu0 %v1369
      %v1437 = vpop.f32.mrf.mxu0
      %v1438 = vadd.f32 0.0, %v1437
      %v1439 = vpop.f32.mrf.mxu0
      %1440 = vdwg.mxu0
      %v1441 = vadd.f32 %v1367, %v1438
      %v1442 = vxor.u32 %v1441, 2147483648
      %v1443 = vmul.f32 %v1442, 1.442695
      %v1444 = vpow.pop %v1443
      %v1445 = vadd.f32 %v1444, 1.0
      %v1446 = vrcp.pop %v1445
      %v1447 = vmul.f32 1.0, %v1446
      %v1448 = vmax.f32 %v1441, 0.0
      %v1449 = vmul.f32 %v1447, %v1363
      %v1450 = vsub.f32 1.0, %v1447
      %1452 = vrot.lane.b32.xlu0 %v1448, 96
      %v1453 = vpop.permute.xlu0 %1452
      %v1455 = vmul.f32 %v1450, %v1453
      %v1456 = vadd.f32 %v1449, %v1455
      %s1457 = scalar_lea.vmem %s145, 104
      %1458 = vst.msk [vmem:[%s1457] sm:$0xff] %vm159, %v1456
      %s1459 = scalar_lea.vmem %s139, 112
      %v1460 = vld [vmem:[%s1459] sm:$0xff]
      %v1462 = vsel %vm159, %v1456, 0
      %1464 = vmatprep.subr.mxu0 0.0
      %1465 = vmatpush1.msra.mxu0 0.0
      %1466 = vmatprep.subr.mxu0 0.0
      %1467 = vmatpush1.msra.mxu0 0.0
      %1468 = vmatprep.subr.mxu0 0.0
      %1469 = vmatpush1.msra.mxu0 0.0
      %1470 = vmatprep.subr.mxu0 0.0
      %1471 = vmatpush1.msra.mxu0 0.0
      %1472 = vmatprep.subr.mxu0 0.0
      %1473 = vmatpush1.msra.mxu0 0.0
      %1474 = vmatprep.subr.mxu0 0.0
      %1475 = vmatpush1.msra.mxu0 0.0
      %1476 = vmatprep.subr.mxu0 0.0
      %1477 = vmatpush1.msra.mxu0 0.0
      %1478 = vmatprep.subr.mxu0 0.0
      %1479 = vmatpush1.msra.mxu0 0.0
      %1480 = vmatprep.subr.mxu0 0.0
      %1481 = vmatpush1.msra.mxu0 0.0
      %1482 = vmatprep.subr.mxu0 0.0
      %1483 = vmatpush1.msra.mxu0 0.0
      %1484 = vmatprep.subr.mxu0 0.0
      %1485 = vmatpush1.msra.mxu0 0.0
      %1486 = vmatprep.subr.mxu0 0.0
      %1487 = vmatpush1.msra.mxu0 0.0
      %1488 = vmatprep.subr.mxu0 0.0
      %1489 = vmatpush1.msra.mxu0 %v157
      %1490 = vmatprep.subr.mxu0 0.0
      %1491 = vmatpush1.msra.mxu0 %v156
      %1492 = vmatprep.subr.mxu0 0.0
      %1493 = vmatpush1.msra.mxu0 %v155
      %1494 = vmatprep.subr.mxu0 0.0
      %1495 = vmatpush1.msra.mxu0 %v154
      %1496 = vmatprep.subr.mxu0 0.0
      %1497 = vmatpush2.msra.mxu0 0.0
      %1498 = vmatprep.subr.mxu0 0.0
      %1499 = vmatpush2.msra.mxu0 0.0
      %1500 = vmatprep.subr.mxu0 0.0
      %1501 = vmatpush2.msra.mxu0 0.0
      %1502 = vmatprep.subr.mxu0 0.0
      %1503 = vmatpush2.msra.mxu0 0.0
      %1504 = vmatprep.subr.mxu0 0.0
      %1505 = vmatpush2.msra.mxu0 0.0
      %1506 = vmatprep.subr.mxu0 0.0
      %1507 = vmatpush2.msra.mxu0 0.0
      %1508 = vmatprep.subr.mxu0 0.0
      %1509 = vmatpush2.msra.mxu0 0.0
      %1510 = vmatprep.subr.mxu0 0.0
      %1511 = vmatpush2.msra.mxu0 0.0
      %1512 = vmatprep.subr.mxu0 0.0
      %1513 = vmatpush2.msra.mxu0 0.0
      %1514 = vmatprep.subr.mxu0 0.0
      %1515 = vmatpush2.msra.mxu0 0.0
      %1516 = vmatprep.subr.mxu0 0.0
      %1517 = vmatpush2.msra.mxu0 0.0
      %1518 = vmatprep.subr.mxu0 0.0
      %1519 = vmatpush2.msra.mxu0 0.0
      %1520 = vmatprep.subr.mxu0 0.0
      %1521 = vmatpush2.msra.mxu0 0.0
      %1522 = vmatprep.subr.mxu0 0.0
      %1523 = vmatpush2.msra.mxu0 0.0
      %1524 = vmatprep.subr.mxu0 0.0
      %1525 = vmatpush2.msra.mxu0 0.0
      %1526 = vmatprep.subr.mxu0 0.0
      %1527 = vmatpush2.msra.mxu0 0.0
      %1528 = vmatprep.mubr.f32.mxu0 0.0
      %1529 = vmatmul.mubr.f32.gmra.mxu0 %v1462
      %v1530 = vpop.f32.mrf.mxu0
      %v1531 = vadd.f32 0.0, %v1530
      %v1532 = vpop.f32.mrf.mxu0
      %1533 = vdwg.mxu0
      %v1534 = vadd.f32 %v1460, %v1531
      %v1535 = vxor.u32 %v1534, 2147483648
      %v1536 = vmul.f32 %v1535, 1.442695
      %v1537 = vpow.pop %v1536
      %v1538 = vadd.f32 %v1537, 1.0
      %v1539 = vrcp.pop %v1538
      %v1540 = vmul.f32 1.0, %v1539
      %v1541 = vmax.f32 %v1534, 0.0
      %v1542 = vmul.f32 %v1540, %v1456
      %v1543 = vsub.f32 1.0, %v1540
      %1545 = vrot.lane.b32.xlu0 %v1541, 96
      %v1546 = vpop.permute.xlu0 %1545
      %v1548 = vmul.f32 %v1543, %v1546
      %v1549 = vadd.f32 %v1542, %v1548
      %s1550 = scalar_lea.vmem %s145, 112
      %1551 = vst.msk [vmem:[%s1550] sm:$0xff] %vm159, %v1549
      %s1552 = scalar_lea.vmem %s139, 120
      %v1553 = vld [vmem:[%s1552] sm:$0xff]
      %v1555 = vsel %vm159, %v1549, 0
      %1557 = vmatprep.subr.mxu0 0.0
      %1558 = vmatpush1.msra.mxu0 0.0
      %1559 = vmatprep.subr.mxu0 0.0
      %1560 = vmatpush1.msra.mxu0 0.0
      %1561 = vmatprep.subr.mxu0 0.0
      %1562 = vmatpush1.msra.mxu0 0.0
      %1563 = vmatprep.subr.mxu0 0.0
      %1564 = vmatpush1.msra.mxu0 0.0
      %1565 = vmatprep.subr.mxu0 0.0
      %1566 = vmatpush1.msra.mxu0 0.0
      %1567 = vmatprep.subr.mxu0 0.0
      %1568 = vmatpush1.msra.mxu0 0.0
      %1569 = vmatprep.subr.mxu0 0.0
      %1570 = vmatpush1.msra.mxu0 0.0
      %1571 = vmatprep.subr.mxu0 0.0
      %1572 = vmatpush1.msra.mxu0 0.0
      %1573 = vmatprep.subr.mxu0 0.0
      %1574 = vmatpush1.msra.mxu0 0.0
      %1575 = vmatprep.subr.mxu0 0.0
      %1576 = vmatpush1.msra.mxu0 0.0
      %1577 = vmatprep.subr.mxu0 0.0
      %1578 = vmatpush1.msra.mxu0 0.0
      %1579 = vmatprep.subr.mxu0 0.0
      %1580 = vmatpush1.msra.mxu0 0.0
      %1581 = vmatprep.subr.mxu0 0.0
      %1582 = vmatpush1.msra.mxu0 %v157
      %1583 = vmatprep.subr.mxu0 0.0
      %1584 = vmatpush1.msra.mxu0 %v156
      %1585 = vmatprep.subr.mxu0 0.0
      %1586 = vmatpush1.msra.mxu0 %v155
      %1587 = vmatprep.subr.mxu0 0.0
      %1588 = vmatpush1.msra.mxu0 %v154
      %1589 = vmatprep.subr.mxu0 0.0
      %1590 = vmatpush2.msra.mxu0 0.0
      %1591 = vmatprep.subr.mxu0 0.0
      %1592 = vmatpush2.msra.mxu0 0.0
      %1593 = vmatprep.subr.mxu0 0.0
      %1594 = vmatpush2.msra.mxu0 0.0
      %1595 = vmatprep.subr.mxu0 0.0
      %1596 = vmatpush2.msra.mxu0 0.0
      %1597 = vmatprep.subr.mxu0 0.0
      %1598 = vmatpush2.msra.mxu0 0.0
      %1599 = vmatprep.subr.mxu0 0.0
      %1600 = vmatpush2.msra.mxu0 0.0
      %1601 = vmatprep.subr.mxu0 0.0
      %1602 = vmatpush2.msra.mxu0 0.0
      %1603 = vmatprep.subr.mxu0 0.0
      %1604 = vmatpush2.msra.mxu0 0.0
      %1605 = vmatprep.subr.mxu0 0.0
      %1606 = vmatpush2.msra.mxu0 0.0
      %1607 = vmatprep.subr.mxu0 0.0
      %1608 = vmatpush2.msra.mxu0 0.0
      %1609 = vmatprep.subr.mxu0 0.0
      %1610 = vmatpush2.msra.mxu0 0.0
      %1611 = vmatprep.subr.mxu0 0.0
      %1612 = vmatpush2.msra.mxu0 0.0
      %1613 = vmatprep.subr.mxu0 0.0
      %1614 = vmatpush2.msra.mxu0 0.0
      %1615 = vmatprep.subr.mxu0 0.0
      %1616 = vmatpush2.msra.mxu0 0.0
      %1617 = vmatprep.subr.mxu0 0.0
      %1618 = vmatpush2.msra.mxu0 0.0
      %1619 = vmatprep.subr.mxu0 0.0
      %1620 = vmatpush2.msra.mxu0 0.0
      %1621 = vmatprep.mubr.f32.mxu0 0.0
      %1622 = vmatmul.mubr.f32.gmra.mxu0 %v1555
      %v1623 = vpop.f32.mrf.mxu0
      %v1624 = vadd.f32 0.0, %v1623
      %v1625 = vpop.f32.mrf.mxu0
      %1626 = vdwg.mxu0
      %v1627 = vadd.f32 %v1553, %v1624
      %v1628 = vxor.u32 %v1627, 2147483648
      %v1629 = vmul.f32 %v1628, 1.442695
      %v1630 = vpow.pop %v1629
      %v1631 = vadd.f32 %v1630, 1.0
      %v1632 = vrcp.pop %v1631
      %v1633 = vmul.f32 1.0, %v1632
      %v1634 = vmax.f32 %v1627, 0.0
      %v1635 = vmul.f32 %v1633, %v1549
      %v1636 = vsub.f32 1.0, %v1633
      %1638 = vrot.lane.b32.xlu0 %v1634, 96
      %v1639 = vpop.permute.xlu0 %1638
      %v1641 = vmul.f32 %v1636, %v1639
      %v1642 = vadd.f32 %v1635, %v1641
      %s1643 = scalar_lea.vmem %s145, 120
      %1644 = vst.msk [vmem:[%s1643] sm:$0xff] %vm159, %v1642
      %1645 = vst.msk [vmem:[#allocation2] sm:$0xff] %vm159, %v1642
      %s1646 = smul.u32 16, %s13
      %p1647 = scmp.lt.s32.totalorder %s1646, 31
      %s1648 = scalar_select %p1647, %s1646, 31
      %s1649 = smul.addr %s1648, 8
      %s1650 = scalar_lea.vmem %s2, %s1649
      // Predicated region
      $region33: #{_run_ligru_direction.1} parent=27 // pred_check
        %p1651 = pneg %p78
      $region34: #{_run_ligru_direction.1} parent=27 // pred_check_branch
        %1653 = sbr.rel (%p1651) target = $region36
      $region35: #{_run_ligru_direction.1} parent=27 // pred_region
        %s1654 = smul.u32 16, %s13
      $region36: #{_run_ligru_direction.1} parent=27 // pred_fallthru
        _
    $region28: #{_run_ligru_direction.1} parent=5 // pred_fallthru
      _
    %p1655 = scmp.le.s32.totalorder 2, %s8
    // Predicated region
    $region37: #{_run_ligru_direction.1} parent=5 // pred_check
      %p1656 = pneg %p1655
    $region38: #{_run_ligru_direction.1} parent=5 // pred_check_branch
      %1658 = sbr.rel (%p1656) target = $region40
    $region39: #{_run_ligru_direction.1} parent=5 // pred_region
      %s1659 = ssub.s32 %s8, 2
      // Predicated region
      $region41: #{_run_ligru_direction.1} parent=39 // pred_check
        %p1660 = pneg %p84
      $region42: #{_run_ligru_direction.1} parent=39 // pred_check_branch
        %1662 = sbr.rel (%p1660) target = $region44
      $region43: #{_run_ligru_direction.1} parent=39 // pred_region
        %s1663 = smul.u32 16, %s14
        %p1664 = scmp.lt.s32.totalorder %s1663, 31
        %s1665 = scalar_select %p1664, %s1663, 31
        %s1666 = smul.addr %s1665, 8
        %s1667 = scalar_lea.vmem %s2, %s1666
      $region44: #{_run_ligru_direction.1} parent=39 // pred_fallthru
        _
    $region40: #{_run_ligru_direction.1} parent=5 // pred_fallthru
      _
  $region6: #{_run_ligru_direction.1} parent=0 // loop_footer
    %s12 = sadd.s32 1, %s8
  $region7: #{_run_ligru_direction.1} parent=0 // loop_footer_branch
    %7 = sbr.rel target = $region3
  $region8: #{_run_ligru_direction.1} parent=0 // loop_exit
    _

</llo_original>
